<compile_context>
chip_gen: v5e
topology: v5e:2x2
jax: 0.10.0
libtpu: 0.0.40
codegen_flags: <defaults>
</compile_context>

<pallas_src>
import functools

import numpy as np
import jax
import jax.numpy as jnp
from jax import lax
from jax.experimental import pallas as pl
from jax.experimental.pallas import tpu as pltpu

# Distinct shifts (k-1)*d for k in {0,1,2}, d in {1,2,4,8,16}.
SHIFTS = (-16, -8, -4, -2, -1, 0, 1, 2, 4, 8, 16)
_MXU_DEPTH = 128   # conservative (v5e); "free at 128" implies free at 256 too


def _block_a_kernel(alpha_ref, x_ref, w1_ref, b1_ref, wp_ref, b2_ref, s2_ref,
                    out_ref, stk_ref, *, n, L, nIn, do_add, resid_in_mm):
    a1 = alpha_ref[0]                 # PReLU alphas from SMEM (scalar path)
    a2 = alpha_ref[1]
    x = x_ref[...]                    # [nIn, Bt*L] f32 (batch merged into lanes)
    cols = x.shape[-1]

    # ---- c1 (1x1 conv) with BN1 folded in; bf16 MXU operands, f32 accum ----
    y1 = jnp.dot(w1_ref[...], x.astype(jnp.bfloat16),
                 preferred_element_type=jnp.float32)
    y1 = y1 + b1_ref[...]
    y1 = jnp.where(y1 > 0, y1, a1 * y1)               # PReLU (br1), f32. [n, cols]

    # Lane position within each batch element of the merged B*L axis: the
    # zero-padding masks must not let shifts read across batch boundaries.
    lane = lax.broadcasted_iota(jnp.int32, (n, cols), 1)
    pos = (lane & (L - 1)) if (L & (L - 1)) == 0 else (lane % L)

    # ---- 11 shifted copies via XLU roll + VPU edge masks, stored straight
    #      into VMEM scratch (aligned stores, bounded vreg live ranges) ----
    for idx, s in enumerate(SHIFTS):
        if s == 0:
            piece = y1
        else:
            r = pltpu.roll(y1, (-s) % cols, axis=1)    # r[:, i] == y1[:, i + s]
            if s > 0:
                piece = jnp.where(pos < L - s, r, 0.0)
            else:
                piece = jnp.where(pos >= -s, r, 0.0)
        stk_ref[pl.ds(idx * n, n), :] = piece
    if resid_in_mm:
        stk_ref[pl.ds(len(SHIFTS) * n, nIn), :] = x    # residual rides the matmul

    # ---- one matmul = all dilated convs + prefix sums + concat + BN2 scale
    #      (+ residual when resid_in_mm).  Bias = BN2 shift. ----
    y2 = jnp.dot(wp_ref[...], stk_ref[...].astype(jnp.bfloat16),
                 preferred_element_type=jnp.float32)
    y2 = y2 + b2_ref[...]
    if do_add and not resid_in_mm:
        y2 = y2 + s2_ref[...] * x                      # VPU residual, full f32
    out_ref[...] = jnp.where(y2 > 0, y2, a2 * y2)      # PReLU (br2)


def _pick_batch_tile(B, nIn, nOut, n, L, budget_bytes):
    # Rough per-batch-element VMEM bytes: x (double-buffered f32) + out
    # (double-buffered f32) + stacked scratch f32 + y1/pieces working set.
    per_b = L * 4 * (2 * nIn + 2 * nOut + (len(SHIFTS) * n + nIn) + 6 * n)
    bt = max(1, min(B, budget_bytes // max(per_b, 1)))
    if B >= 2:
        bt = max(1, min(bt, B // 2))   # keep >= 2 grid steps (v7x: 2 TensorCores)
    while B % bt:                      # batch-aligned blocks, no ragged tiles
        bt -= 1
    return bt


def dilated_conv_block_a(x, params, *, add=True, vmem_budget_bytes=20 << 20):
    """x: [B, nIn, L] float32 -> [B, nOut, L] float32 (inference-mode BN)."""
    (wc1, bc1, s1, sh1, a1, wd1, wd2, wd4, wd8, wd16, s2, sh2, a2) = params
    B, nIn, L = x.shape
    n = wc1.shape[0]
    nOut = s2.shape[0]
    do_add = bool(add) and (nIn == nOut)
    assert n % 8 == 0 and nIn % 8 == 0 and nOut % 8 == 0, (
        "channel groups must be multiples of 8")
    assert L % 128 == 0, "sequence length must be lane-dense (multiple of 128)"
    assert L > 2 * max(SHIFTS)

    ns = len(SHIFTS) * n
    # Route the residual through the matmul only if it does not add an MXU pass.
    resid_in_mm = do_add and (pl.cdiv(ns + nIn, _MXU_DEPTH) == pl.cdiv(ns, _MXU_DEPTH))
    n_stk = ns + (nIn if resid_in_mm else 0)

    # ---- host-side folding / packing ----
    # BN1 folded into the 1x1 conv: y1 = (s1*Wc1) @ x + (s1*bc1 + sh1)
    w1f = (s1[:, None] * wc1[:, :, 0]).astype(jnp.bfloat16)           # [n, nIn]
    b1f = (s1 * bc1 + sh1).reshape(n, 1).astype(jnp.float32)

    def conv_cols(wd, d):
        # wd: [Cout, n, 3] -> columns of the packed weight over the 11 shifts.
        cout = wd.shape[0]
        w = jnp.zeros((cout, ns), jnp.float32)
        for k in range(3):
            j = SHIFTS.index((k - 1) * d) * n
            w = w.at[:, j:j + n].add(wd[:, :, k])
        return w

    w_d1 = conv_cols(wd1, 1)
    w_d2 = conv_cols(wd2, 2)
    w_d4 = conv_cols(wd4, 4)
    w_d8 = conv_cols(wd8, 8)
    w_d16 = conv_cols(wd16, 16)
    # Prefix-sum structure + channel concat folded into the rows.
    w_comb = jnp.concatenate(
        [w_d1,
         w_d2,
         w_d2 + w_d4,
         w_d2 + w_d4 + w_d8,
         w_d2 + w_d4 + w_d8 + w_d16], axis=0)                         # [nOut, 11n]
    wp = s2[:, None] * w_comb                                         # fold BN2 scale
    if resid_in_mm:
        wp = jnp.concatenate([wp, jnp.diag(s2)], axis=1)              # residual block
    wp = wp.astype(jnp.bfloat16)                                      # [nOut, n_stk]
    b2f = sh2.reshape(nOut, 1).astype(jnp.float32)                    # BN2 shift as bias
    s2col = s2.reshape(nOut, 1).astype(jnp.float32)                   # for VPU residual
    alphas = jnp.stack([a1, a2]).astype(jnp.float32)                  # [2] -> SMEM

    # ---- batch merged into the lane (streaming) dimension ----
    Bt = _pick_batch_tile(B, nIn, nOut, n, L, vmem_budget_bytes)
    BtL = Bt * L
    xt = jnp.transpose(x, (1, 0, 2)).reshape(nIn, B * L)

    def w_spec(a):
        nd = a.ndim
        return pl.BlockSpec(a.shape, lambda i, _nd=nd: (0,) * _nd)

    kernel = functools.partial(_block_a_kernel, n=n, L=L, nIn=nIn,
                               do_add=do_add, resid_in_mm=resid_in_mm)

    out = pl.pallas_call(
        kernel,
        out_shape=jax.ShapeDtypeStruct((nOut, B * L), jnp.float32),
        grid=(B // Bt,),
        in_specs=[
            pl.BlockSpec(memory_space=pltpu.MemorySpace.SMEM),        # alphas
            pl.BlockSpec((nIn, BtL), lambda i: (0, i)),               # x lane chunk
            w_spec(w1f), w_spec(b1f), w_spec(wp), w_spec(b2f), w_spec(s2col),
        ],
        out_specs=pl.BlockSpec((nOut, BtL), lambda i: (0, i)),
        scratch_shapes=[pltpu.VMEM((n_stk, BtL), jnp.float32)],
        compiler_params=pltpu.CompilerParams(
            dimension_semantics=("parallel",),
            vmem_limit_bytes=48 * 1024 * 1024),
    )(alphas, xt, w1f, b1f, wp, b2f, s2col)

    return jnp.transpose(out.reshape(nOut, B, L), (1, 0, 2))


# ---------------- plain-JAX reference (for correctness check) ----------------
def ref_forward(x, params, *, add=True):
    (wc1, bc1, s1, sh1, a1, wd1, wd2, wd4, wd8, wd16, s2, sh2, a2) = params

    def conv(xx, w, d=1, pad=0):
        return lax.conv_general_dilated(
            xx, w, window_strides=(1,), padding=[(pad, pad)],
            rhs_dilation=(d,), dimension_numbers=('NCH', 'OIH', 'NCH'),
            precision=lax.Precision.HIGHEST)

    def prelu(xx, a):
        return jnp.where(xx > 0, xx, a * xx)

    y1 = conv(x, wc1) + bc1[None, :, None]
    y1 = y1 * s1[None, :, None] + sh1[None, :, None]
    y1 = prelu(y1, a1)
    d1 = conv(y1, wd1, d=1, pad=1)
    d2 = conv(y1, wd2, d=2, pad=2)
    d4 = conv(y1, wd4, d=4, pad=4)
    d8 = conv(y1, wd8, d=8, pad=8)
    d16 = conv(y1, wd16, d=16, pad=16)
    add1 = d2
    add2 = add1 + d4
    add3 = add2 + d8
    add4 = add3 + d16
    comb = jnp.concatenate([d1, add1, add2, add3, add4], axis=1)
    if add and x.shape[1] == comb.shape[1]:
        comb = x + comb
    y2 = comb * s2[None, :, None] + sh2[None, :, None]
    return prelu(y2, a2)


if __name__ == "__main__":
    # Shapes consistent with the module: nIn == nOut so the residual add is
    # active; nOut divisible by 5*8 so n == n1 == 8 (sublane aligned); L = 128
    # (lane-dense); B = 8 so the batch-merge gives 2 grid steps of 4*128 lanes.
    B, L = 8, 128
    nIn = nOut = 40
    n = nOut // 5            # 8
    n1 = nOut - 4 * n        # 8
    eps = 1e-5

    key = jax.random.PRNGKey(0)
    ks = jax.random.split(key, 20)
    x = jax.random.normal(ks[0], (B, nIn, L), jnp.float32)

    # c1 (1x1 conv, with bias)
    wc1 = jax.random.normal(ks[1], (n, nIn, 1), jnp.float32) * 0.1
    bc1 = jax.random.normal(ks[2], (n,), jnp.float32) * 0.1
    # br1 BatchNorm (eval mode) -> folded scale/shift; PReLU alpha (scalar)
    g1 = 0.5 + jax.random.uniform(ks[3], (n,), jnp.float32)
    b1 = jax.random.normal(ks[4], (n,), jnp.float32) * 0.1
    m1 = jax.random.normal(ks[5], (n,), jnp.float32) * 0.1
    v1 = 0.5 + jax.random.uniform(ks[6], (n,), jnp.float32)
    s1 = g1 / jnp.sqrt(v1 + eps)
    sh1 = b1 - m1 * s1
    a1 = jnp.float32(0.25)
    # dilated convs (bias=False), PyTorch layout [Cout, Cin, K]
    wd1 = jax.random.normal(ks[7], (n1, n, 3), jnp.float32) * 0.1
    wd2 = jax.random.normal(ks[8], (n, n, 3), jnp.float32) * 0.1
    wd4 = jax.random.normal(ks[9], (n, n, 3), jnp.float32) * 0.1
    wd8 = jax.random.normal(ks[10], (n, n, 3), jnp.float32) * 0.1
    wd16 = jax.random.normal(ks[11], (n, n, 3), jnp.float32) * 0.1
    # br2 BatchNorm (eval mode) + PReLU alpha
    g2 = 0.5 + jax.random.uniform(ks[12], (nOut,), jnp.float32)
    b2 = jax.random.normal(ks[13], (nOut,), jnp.float32) * 0.1
    m2 = jax.random.normal(ks[14], (nOut,), jnp.float32) * 0.1
    v2 = 0.5 + jax.random.uniform(ks[15], (nOut,), jnp.float32)
    s2 = g2 / jnp.sqrt(v2 + eps)
    sh2 = b2 - m2 * s2
    a2 = jnp.float32(0.2)

    params = (wc1, bc1, s1, sh1, a1, wd1, wd2, wd4, wd8, wd16, s2, sh2, a2)

    out = jax.block_until_ready(dilated_conv_block_a(x, params, add=True))
    ref = jax.block_until_ready(ref_forward(x, params, add=True))

    assert out.shape == (B, nOut, L), out.shape
    # bf16 MXU operands with f32 accumulation -> ~1e-2 level numerical noise.
    np.testing.assert_allclose(np.asarray(out), np.asarray(ref),
                               rtol=2e-2, atol=2e-2)
    print("KERNEL_OK")
</pallas_src>

<mosaic_0001>
module attributes {stable_mosaic.version = 11 : i64} {
  func.func @_block_a_kernel(%arg0: i32, %arg1: memref<2xf32, #tpu.memory_space<smem>>, %arg2: memref<40x512xf32, #tpu.memory_space<vmem>>, %arg3: memref<8x40xbf16, #tpu.memory_space<vmem>>, %arg4: memref<8x1xf32, #tpu.memory_space<vmem>>, %arg5: memref<40x128xbf16, #tpu.memory_space<vmem>>, %arg6: memref<40x1xf32, #tpu.memory_space<vmem>>, %arg7: memref<40x1xf32, #tpu.memory_space<vmem>>, %arg8: memref<40x512xf32, #tpu.memory_space<vmem>>, %arg9: memref<128x512xf32, #tpu.memory_space<vmem>>) attributes {dimension_semantics = [#tpu.dimension_semantics<parallel>], iteration_bounds = array<i64: 2>, scalar_prefetch = 0 : i64, scratch_operands = 1 : i64, tpu.core_type = #tpu.core_type<tc>, window_params = [{transform_indices = @transform_0, window_bounds = array<i64: 2>}, {transform_indices = @transform_1, window_bounds = array<i64: 40, 512>}, {pipeline_mode = #tpu.pipeline_mode<synchronous>, transform_indices = @transform_2, window_bounds = array<i64: 8, 40>}, {pipeline_mode = #tpu.pipeline_mode<synchronous>, transform_indices = @transform_3, window_bounds = array<i64: 8, 1>}, {pipeline_mode = #tpu.pipeline_mode<synchronous>, transform_indices = @transform_4, window_bounds = array<i64: 40, 128>}, {pipeline_mode = #tpu.pipeline_mode<synchronous>, transform_indices = @transform_5, window_bounds = array<i64: 40, 1>}, {pipeline_mode = #tpu.pipeline_mode<synchronous>, transform_indices = @transform_6, window_bounds = array<i64: 40, 1>}, {transform_indices = @transform_7, window_bounds = array<i64: 40, 512>}]} {
    %c0 = arith.constant 0 : index
    %0 = memref.load %arg1[%c0] : memref<2xf32, #tpu.memory_space<smem>>
    %c1 = arith.constant 1 : index
    %1 = memref.load %arg1[%c1] : memref<2xf32, #tpu.memory_space<smem>>
    %c0_0 = arith.constant 0 : index
    %c0_1 = arith.constant 0 : index
    %2 = vector.load %arg2[%c0_0, %c0_1] : memref<40x512xf32, #tpu.memory_space<vmem>>, vector<40x512xf32>
    %c0_2 = arith.constant 0 : index
    %c0_3 = arith.constant 0 : index
    %3 = vector.load %arg3[%c0_2, %c0_3] : memref<8x40xbf16, #tpu.memory_space<vmem>>, vector<8x40xbf16>
    %4 = arith.truncf %2 : vector<40x512xf32> to vector<40x512xbf16>
    %cst = arith.constant dense<0.000000e+00> : vector<8x512xf32>
    %5 = tpu.matmul %3, %4, %cst {dimension_numbers = #tpu.dot_dimension_numbers<[1], [0], [0], [1], [0, 0, 1, 1], [], []>} : vector<8x40xbf16>, vector<40x512xbf16>, vector<8x512xf32> -> vector<8x512xf32>
    %c0_4 = arith.constant 0 : index
    %c0_5 = arith.constant 0 : index
    %6 = vector.load %arg4[%c0_4, %c0_5] : memref<8x1xf32, #tpu.memory_space<vmem>>, vector<8x1xf32>
    %7 = vector.broadcast %6 : vector<8x1xf32> to vector<8x512xf32>
    %8 = arith.addf %5, %7 : vector<8x512xf32>
    %cst_6 = arith.constant 0.000000e+00 : f32
    %9 = vector.broadcast %cst_6 : f32 to vector<8x512xf32>
    %10 = arith.cmpf ogt, %8, %9 : vector<8x512xf32>
    %11 = vector.broadcast %0 : f32 to vector<8x512xf32>
    %12 = arith.mulf %11, %8 : vector<8x512xf32>
    %13 = arith.select %10, %8, %12 : vector<8x512xi1>, vector<8x512xf32>
    %14 = tpu.iota {dimensions = array<i32: 1>} : vector<8x512xi32>
    %c127_i32 = arith.constant 127 : i32
    %15 = vector.broadcast %c127_i32 : i32 to vector<8x512xi32>
    %16 = arith.andi %14, %15 : vector<8x512xi32>
    %c16_i32 = arith.constant 16 : i32
    %17 = tpu.dynamic_rotate %13 by %c16_i32 dim 1 : vector<8x512xf32>, i32 -> vector<8x512xf32>
    %c16_i32_7 = arith.constant 16 : i32
    %18 = vector.broadcast %c16_i32_7 : i32 to vector<8x512xi32>
    %19 = arith.cmpi sge, %16, %18 : vector<8x512xi32>
    %cst_8 = arith.constant 0.000000e+00 : f32
    %20 = vector.broadcast %cst_8 : f32 to vector<8x512xf32>
    %21 = arith.select %19, %17, %20 : vector<8x512xi1>, vector<8x512xf32>
    %c0_9 = arith.constant 0 : index
    %c0_10 = arith.constant 0 : index
    %22 = vector.load %arg9[%c0_9, %c0_10] : memref<128x512xf32, #tpu.memory_space<vmem>>, vector<8x512xf32>
    tpu.vector_store %arg9[%c0_9, %c0_10], %21 {strides = array<i32>} : memref<128x512xf32, #tpu.memory_space<vmem>>, vector<8x512xf32>,
    %c8_i32 = arith.constant 8 : i32
    %23 = tpu.dynamic_rotate %13 by %c8_i32 dim 1 : vector<8x512xf32>, i32 -> vector<8x512xf32>
    %c8_i32_11 = arith.constant 8 : i32
    %24 = vector.broadcast %c8_i32_11 : i32 to vector<8x512xi32>
    %25 = arith.cmpi sge, %16, %24 : vector<8x512xi32>
    %cst_12 = arith.constant 0.000000e+00 : f32
    %26 = vector.broadcast %cst_12 : f32 to vector<8x512xf32>
    %27 = arith.select %25, %23, %26 : vector<8x512xi1>, vector<8x512xf32>
    %c8 = arith.constant 8 : index
    %c0_13 = arith.constant 0 : index
    %28 = vector.load %arg9[%c8, %c0_13] : memref<128x512xf32, #tpu.memory_space<vmem>>, vector<8x512xf32>
    tpu.vector_store %arg9[%c8, %c0_13], %27 {strides = array<i32>} : memref<128x512xf32, #tpu.memory_space<vmem>>, vector<8x512xf32>,
    %c4_i32 = arith.constant 4 : i32
    %29 = tpu.dynamic_rotate %13 by %c4_i32 dim 1 : vector<8x512xf32>, i32 -> vector<8x512xf32>
    %c4_i32_14 = arith.constant 4 : i32
    %30 = vector.broadcast %c4_i32_14 : i32 to vector<8x512xi32>
    %31 = arith.cmpi sge, %16, %30 : vector<8x512xi32>
    %cst_15 = arith.constant 0.000000e+00 : f32
    %32 = vector.broadcast %cst_15 : f32 to vector<8x512xf32>
    %33 = arith.select %31, %29, %32 : vector<8x512xi1>, vector<8x512xf32>
    %c16 = arith.constant 16 : index
    %c0_16 = arith.constant 0 : index
    %34 = vector.load %arg9[%c16, %c0_16] : memref<128x512xf32, #tpu.memory_space<vmem>>, vector<8x512xf32>
    tpu.vector_store %arg9[%c16, %c0_16], %33 {strides = array<i32>} : memref<128x512xf32, #tpu.memory_space<vmem>>, vector<8x512xf32>,
    %c2_i32 = arith.constant 2 : i32
    %35 = tpu.dynamic_rotate %13 by %c2_i32 dim 1 : vector<8x512xf32>, i32 -> vector<8x512xf32>
    %c2_i32_17 = arith.constant 2 : i32
    %36 = vector.broadcast %c2_i32_17 : i32 to vector<8x512xi32>
    %37 = arith.cmpi sge, %16, %36 : vector<8x512xi32>
    %cst_18 = arith.constant 0.000000e+00 : f32
    %38 = vector.broadcast %cst_18 : f32 to vector<8x512xf32>
    %39 = arith.select %37, %35, %38 : vector<8x512xi1>, vector<8x512xf32>
    %c24 = arith.constant 24 : index
    %c0_19 = arith.constant 0 : index
    %40 = vector.load %arg9[%c24, %c0_19] : memref<128x512xf32, #tpu.memory_space<vmem>>, vector<8x512xf32>
    tpu.vector_store %arg9[%c24, %c0_19], %39 {strides = array<i32>} : memref<128x512xf32, #tpu.memory_space<vmem>>, vector<8x512xf32>,
    %c1_i32 = arith.constant 1 : i32
    %41 = tpu.dynamic_rotate %13 by %c1_i32 dim 1 : vector<8x512xf32>, i32 -> vector<8x512xf32>
    %c1_i32_20 = arith.constant 1 : i32
    %42 = vector.broadcast %c1_i32_20 : i32 to vector<8x512xi32>
    %43 = arith.cmpi sge, %16, %42 : vector<8x512xi32>
    %cst_21 = arith.constant 0.000000e+00 : f32
    %44 = vector.broadcast %cst_21 : f32 to vector<8x512xf32>
    %45 = arith.select %43, %41, %44 : vector<8x512xi1>, vector<8x512xf32>
    %c32 = arith.constant 32 : index
    %c0_22 = arith.constant 0 : index
    %46 = vector.load %arg9[%c32, %c0_22] : memref<128x512xf32, #tpu.memory_space<vmem>>, vector<8x512xf32>
    tpu.vector_store %arg9[%c32, %c0_22], %45 {strides = array<i32>} : memref<128x512xf32, #tpu.memory_space<vmem>>, vector<8x512xf32>,
    %c40 = arith.constant 40 : index
    %c0_23 = arith.constant 0 : index
    %47 = vector.load %arg9[%c40, %c0_23] : memref<128x512xf32, #tpu.memory_space<vmem>>, vector<8x512xf32>
    tpu.vector_store %arg9[%c40, %c0_23], %13 {strides = array<i32>} : memref<128x512xf32, #tpu.memory_space<vmem>>, vector<8x512xf32>,
    %c511_i32 = arith.constant 511 : i32
    %48 = tpu.dynamic_rotate %13 by %c511_i32 dim 1 : vector<8x512xf32>, i32 -> vector<8x512xf32>
    %c127_i32_24 = arith.constant 127 : i32
    %49 = vector.broadcast %c127_i32_24 : i32 to vector<8x512xi32>
    %50 = arith.cmpi slt, %16, %49 : vector<8x512xi32>
    %cst_25 = arith.constant 0.000000e+00 : f32
    %51 = vector.broadcast %cst_25 : f32 to vector<8x512xf32>
    %52 = arith.select %50, %48, %51 : vector<8x512xi1>, vector<8x512xf32>
    %c48 = arith.constant 48 : index
    %c0_26 = arith.constant 0 : index
    %53 = vector.load %arg9[%c48, %c0_26] : memref<128x512xf32, #tpu.memory_space<vmem>>, vector<8x512xf32>
    tpu.vector_store %arg9[%c48, %c0_26], %52 {strides = array<i32>} : memref<128x512xf32, #tpu.memory_space<vmem>>, vector<8x512xf32>,
    %c510_i32 = arith.constant 510 : i32
    %54 = tpu.dynamic_rotate %13 by %c510_i32 dim 1 : vector<8x512xf32>, i32 -> vector<8x512xf32>
    %c126_i32 = arith.constant 126 : i32
    %55 = vector.broadcast %c126_i32 : i32 to vector<8x512xi32>
    %56 = arith.cmpi slt, %16, %55 : vector<8x512xi32>
    %cst_27 = arith.constant 0.000000e+00 : f32
    %57 = vector.broadcast %cst_27 : f32 to vector<8x512xf32>
    %58 = arith.select %56, %54, %57 : vector<8x512xi1>, vector<8x512xf32>
    %c56 = arith.constant 56 : index
    %c0_28 = arith.constant 0 : index
    %59 = vector.load %arg9[%c56, %c0_28] : memref<128x512xf32, #tpu.memory_space<vmem>>, vector<8x512xf32>
    tpu.vector_store %arg9[%c56, %c0_28], %58 {strides = array<i32>} : memref<128x512xf32, #tpu.memory_space<vmem>>, vector<8x512xf32>,
    %c508_i32 = arith.constant 508 : i32
    %60 = tpu.dynamic_rotate %13 by %c508_i32 dim 1 : vector<8x512xf32>, i32 -> vector<8x512xf32>
    %c124_i32 = arith.constant 124 : i32
    %61 = vector.broadcast %c124_i32 : i32 to vector<8x512xi32>
    %62 = arith.cmpi slt, %16, %61 : vector<8x512xi32>
    %cst_29 = arith.constant 0.000000e+00 : f32
    %63 = vector.broadcast %cst_29 : f32 to vector<8x512xf32>
    %64 = arith.select %62, %60, %63 : vector<8x512xi1>, vector<8x512xf32>
    %c64 = arith.constant 64 : index
    %c0_30 = arith.constant 0 : index
    %65 = vector.load %arg9[%c64, %c0_30] : memref<128x512xf32, #tpu.memory_space<vmem>>, vector<8x512xf32>
    tpu.vector_store %arg9[%c64, %c0_30], %64 {strides = array<i32>} : memref<128x512xf32, #tpu.memory_space<vmem>>, vector<8x512xf32>,
    %c504_i32 = arith.constant 504 : i32
    %66 = tpu.dynamic_rotate %13 by %c504_i32 dim 1 : vector<8x512xf32>, i32 -> vector<8x512xf32>
    %c120_i32 = arith.constant 120 : i32
    %67 = vector.broadcast %c120_i32 : i32 to vector<8x512xi32>
    %68 = arith.cmpi slt, %16, %67 : vector<8x512xi32>
    %cst_31 = arith.constant 0.000000e+00 : f32
    %69 = vector.broadcast %cst_31 : f32 to vector<8x512xf32>
    %70 = arith.select %68, %66, %69 : vector<8x512xi1>, vector<8x512xf32>
    %c72 = arith.constant 72 : index
    %c0_32 = arith.constant 0 : index
    %71 = vector.load %arg9[%c72, %c0_32] : memref<128x512xf32, #tpu.memory_space<vmem>>, vector<8x512xf32>
    tpu.vector_store %arg9[%c72, %c0_32], %70 {strides = array<i32>} : memref<128x512xf32, #tpu.memory_space<vmem>>, vector<8x512xf32>,
    %c496_i32 = arith.constant 496 : i32
    %72 = tpu.dynamic_rotate %13 by %c496_i32 dim 1 : vector<8x512xf32>, i32 -> vector<8x512xf32>
    %c112_i32 = arith.constant 112 : i32
    %73 = vector.broadcast %c112_i32 : i32 to vector<8x512xi32>
    %74 = arith.cmpi slt, %16, %73 : vector<8x512xi32>
    %cst_33 = arith.constant 0.000000e+00 : f32
    %75 = vector.broadcast %cst_33 : f32 to vector<8x512xf32>
    %76 = arith.select %74, %72, %75 : vector<8x512xi1>, vector<8x512xf32>
    %c80 = arith.constant 80 : index
    %c0_34 = arith.constant 0 : index
    %77 = vector.load %arg9[%c80, %c0_34] : memref<128x512xf32, #tpu.memory_space<vmem>>, vector<8x512xf32>
    tpu.vector_store %arg9[%c80, %c0_34], %76 {strides = array<i32>} : memref<128x512xf32, #tpu.memory_space<vmem>>, vector<8x512xf32>,
    %c88 = arith.constant 88 : index
    %c0_35 = arith.constant 0 : index
    %78 = vector.load %arg9[%c88, %c0_35] : memref<128x512xf32, #tpu.memory_space<vmem>>, vector<40x512xf32>
    tpu.vector_store %arg9[%c88, %c0_35], %2 {strides = array<i32>} : memref<128x512xf32, #tpu.memory_space<vmem>>, vector<40x512xf32>,
    %c0_36 = arith.constant 0 : index
    %c0_37 = arith.constant 0 : index
    %79 = vector.load %arg5[%c0_36, %c0_37] : memref<40x128xbf16, #tpu.memory_space<vmem>>, vector<40x128xbf16>
    %c0_38 = arith.constant 0 : index
    %c0_39 = arith.constant 0 : index
    %80 = vector.load %arg9[%c0_38, %c0_39] : memref<128x512xf32, #tpu.memory_space<vmem>>, vector<128x512xf32>
    %81 = arith.truncf %80 : vector<128x512xf32> to vector<128x512xbf16>
    %cst_40 = arith.constant dense<0.000000e+00> : vector<40x512xf32>
    %82 = tpu.matmul %79, %81, %cst_40 {dimension_numbers = #tpu.dot_dimension_numbers<[1], [0], [0], [1], [0, 0, 1, 1], [], []>} : vector<40x128xbf16>, vector<128x512xbf16>, vector<40x512xf32> -> vector<40x512xf32>
    %c0_41 = arith.constant 0 : index
    %c0_42 = arith.constant 0 : index
    %83 = vector.load %arg6[%c0_41, %c0_42] : memref<40x1xf32, #tpu.memory_space<vmem>>, vector<40x1xf32>
    %84 = vector.broadcast %83 : vector<40x1xf32> to vector<40x512xf32>
    %85 = arith.addf %82, %84 : vector<40x512xf32>
    %cst_43 = arith.constant 0.000000e+00 : f32
    %86 = vector.broadcast %cst_43 : f32 to vector<40x512xf32>
    %87 = arith.cmpf ogt, %85, %86 : vector<40x512xf32>
    %88 = vector.broadcast %1 : f32 to vector<40x512xf32>
    %89 = arith.mulf %88, %85 : vector<40x512xf32>
    %90 = arith.select %87, %85, %89 : vector<40x512xi1>, vector<40x512xf32>
    %c0_44 = arith.constant 0 : index
    %c0_45 = arith.constant 0 : index
    %91 = vector.load %arg8[%c0_44, %c0_45] : memref<40x512xf32, #tpu.memory_space<vmem>>, vector<40x512xf32>
    tpu.vector_store %arg8[%c0_44, %c0_45], %90 {strides = array<i32>} : memref<40x512xf32, #tpu.memory_space<vmem>>, vector<40x512xf32>,
    return
  }
  func.func @transform_0(%arg0: i32) -> i32 {
    %c0_i32 = arith.constant 0 : i32
    %c0_i32_0 = arith.constant 0 : i32
    return %c0_i32 : i32
  }
  func.func @transform_1(%arg0: i32) -> (i32, i32) {
    %c0_i32 = arith.constant 0 : i32
    %c0_i32_0 = arith.constant 0 : i32
    return %c0_i32, %arg0 : i32, i32
  }
  func.func @transform_2(%arg0: i32) -> (i32, i32) {
    %c0_i32 = arith.constant 0 : i32
    %c0_i32_0 = arith.constant 0 : i32
    %c0_i32_1 = arith.constant 0 : i32
    return %c0_i32, %c0_i32_0 : i32, i32
  }
  func.func @transform_3(%arg0: i32) -> (i32, i32) {
    %c0_i32 = arith.constant 0 : i32
    %c0_i32_0 = arith.constant 0 : i32
    %c0_i32_1 = arith.constant 0 : i32
    return %c0_i32, %c0_i32_0 : i32, i32
  }
  func.func @transform_4(%arg0: i32) -> (i32, i32) {
    %c0_i32 = arith.constant 0 : i32
    %c0_i32_0 = arith.constant 0 : i32
    %c0_i32_1 = arith.constant 0 : i32
    return %c0_i32, %c0_i32_0 : i32, i32
  }
  func.func @transform_5(%arg0: i32) -> (i32, i32) {
    %c0_i32 = arith.constant 0 : i32
    %c0_i32_0 = arith.constant 0 : i32
    %c0_i32_1 = arith.constant 0 : i32
    return %c0_i32, %c0_i32_0 : i32, i32
  }
  func.func @transform_6(%arg0: i32) -> (i32, i32) {
    %c0_i32 = arith.constant 0 : i32
    %c0_i32_0 = arith.constant 0 : i32
    %c0_i32_1 = arith.constant 0 : i32
    return %c0_i32, %c0_i32_0 : i32, i32
  }
  func.func @transform_7(%arg0: i32) -> (i32, i32) {
    %c0_i32 = arith.constant 0 : i32
    %c0_i32_0 = arith.constant 0 : i32
    return %c0_i32, %arg0 : i32, i32
  }
}

</mosaic_0001>

<llo_original>
// kernel: tpu_custom_call.1
$region0: #{tpu_custom_call.1}
  #allocation0 [shape = 'u32[]', space=smem, size = 0x4, offset = 0x4, fixed_abs, tag = 'smem constant byte address 0x4 - core index']
  #allocation1 [shape = 'u32[72,128]{1,0:T(1,128)}', space=vmem, size = 0x9000, scoped, tag = 'internal scratch']
  #allocation2 [shape = 'f32[128,512]{1,0:T(8,128)}', space=vmem, size = 0x40000, scoped, tag = 'scratch operand']
  %s0 = inlined_call_operand.vmem [shape: f32[2], index: 0, kind: input, shape index: {}]
  %s1 = inlined_call_operand.hbm [shape: f32[40,1024], index: 1, kind: input, shape index: {}]
  %s2 = inlined_call_operand.vmem [shape: bf16[8,40], index: 2, kind: input, shape index: {}]
  %s3 = inlined_call_operand.vmem [shape: f32[8,1], index: 3, kind: input, shape index: {}]
  %s4 = inlined_call_operand.vmem [shape: bf16[40,128], index: 4, kind: input, shape index: {}]
  %s5 = inlined_call_operand.vmem [shape: f32[40,1], index: 5, kind: input, shape index: {}]
  %s6 = inlined_call_operand.vmem [shape: f32[40,1], index: 6, kind: input, shape index: {}]
  %s7 = inlined_call_operand.hbm [shape: f32[40,1024], index: 7, kind: output, shape index: {}]
  %s8 = sld [smem:[#allocation0]]
  $region69: #{tpu_custom_call.1} parent=0
    _
  %s10 = ssub.s32 1, %s8
  %s11 = scalar_select 0, %s10, %s8
  $region1: #{tpu_custom_call.1} parent=0
    #allocation3 [shape = 'u8[512]{0}', space=smem, size = 0x200, scoped, tag = 'input window, operand 0, single buffered']
    #allocation4 [shape = 's32[2]{0}', space=sflag, size = 0x8, scoped, tag = 'scoped memory for tpu_custom_call.1']
    #allocation5 [shape = 's32[2]{0}', space=sflag, size = 0x8, scoped, tag = 'scoped memory for tpu_custom_call.1']
    #allocation6 [shape = 's32[2]{0}', space=sflag, size = 0x8, scoped, tag = 'scoped memory for tpu_custom_call.1']
    #allocation7 [shape = 'u8[163840]{0}', space=vmem, size = 0x28000, scoped, tag = 'input window, operand 1']
    #allocation8 [shape = 'u8[163840]{0}', space=vmem, size = 0x28000, scoped, tag = 'output window, operand 0']
    %12 = vsyncpa [#allocation6], 0
    %13 = vsyncpa [#allocation4], 0
    %s14 = scalar_lea.sflag [#allocation4], 1
    %15 = vsyncpa %s14, 0
    %16 = vsyncpa [#allocation5], 0
    %s17 = scalar_lea.sflag [#allocation5], 1
    %18 = vsyncpa %s17, 0
    loop: start=0, step=1, limit=4
    $region2: #{tpu_custom_call.1} parent=1 // loop_pre_header
      _
    $region3: #{tpu_custom_call.1} parent=1 // loop_header
      %s20 = sphi 0, %s24
      %p21 = scmp.ge.s32.totalorder %s20, 4
      %s28 = sphi 0, %s28
      %s30 = sphi 0, %s28
      %s31 = sphi 0, %s30
      %s45 = sphi 0, %s31
      %s51 = sphi 0, %s53
      %s54 = sphi 0, %s51
      %s55 = sphi 0, %s54
      %s71 = sphi 0, %s55
      %s75 = sphi 0, %s75
      %s77 = sphi 0, %s75
      %s78 = sphi 0, %s77
      %s92 = sphi 0, %s78
      %s96 = sphi 0, %s96
      %s98 = sphi 0, %s96
      %s99 = sphi 0, %s98
      %s113 = sphi 0, %s99
      %s117 = sphi 0, %s117
      %s119 = sphi 0, %s117
      %s120 = sphi 0, %s119
      %s134 = sphi 0, %s120
      %s138 = sphi 0, %s138
      %s140 = sphi 0, %s138
      %s141 = sphi 0, %s140
      %s155 = sphi 0, %s141
      %s159 = sphi 0, %s159
      %s161 = sphi 0, %s159
      %s162 = sphi 0, %s161
      %s176 = sphi 0, %s162
      %s182 = sphi 0, %s184
      %s185 = sphi 0, %s182
      %s186 = sphi 0, %s185
      %s202 = sphi 0, %s186
    $region4: #{tpu_custom_call.1} parent=1 // loop_header_branch
      %23 = sbr.rel (%p21) target = $region8
    $region5: #{tpu_custom_call.1} parent=1 // loop_body
      %s25 = ssub.s32 %s20, 1
      %s26 = ssub.s32 %s20, 2
      %s27 = sadd.s32 %s20, 1
      %s29 = sadd.s32 %s28, 1
      %p32 = scmp.eq.s32.totalorder %s20, 1
      %p33 = scmp.ne.s32.totalorder %s28, %s30
      %p34 = scmp.eq.s32.totalorder %s20, 0
      %p35 = por %p33, %p34
      %p36 = scmp.ne.s32.totalorder %s28, %s30
      %p37 = scmp.eq.s32.totalorder %s25, 1
      %p38 = por %p36, %p37
      %p39 = scmp.ne.s32.totalorder %s30, %s31
      %p40 = scmp.eq.s32.totalorder %s25, 0
      %p41 = por %p39, %p40
      %p42 = scmp.ne.s32.totalorder %s30, %s31
      %p43 = scmp.eq.s32.totalorder %s26, 1
      %p44 = por %p42, %p43
      %p46 = scmp.ne.s32.totalorder %s31, %s45
      %p47 = scmp.eq.s32.totalorder %s26, 0
      %p48 = por %p46, %p47
      %s49 = ssub.s32 %s20, %s27
      %p50 = scmp.eq.s32.totalorder %s49, 0
      %s52 = sadd.s32 %s51, 1
      %s53 = scalar_select %p50, %s51, %s52
      %p56 = pneg %p50
      %p57 = scmp.eq.s32.totalorder %s20, 1
      %p58 = por %p56, %p57
      %p59 = scmp.ne.s32.totalorder %s51, %s54
      %p60 = scmp.eq.s32.totalorder %s20, 0
      %p61 = por %p59, %p60
      %p62 = scmp.ne.s32.totalorder %s51, %s54
      %p63 = scmp.eq.s32.totalorder %s25, 1
      %p64 = por %p62, %p63
      %p65 = scmp.ne.s32.totalorder %s54, %s55
      %p66 = scmp.eq.s32.totalorder %s25, 0
      %p67 = por %p65, %p66
      %p68 = scmp.ne.s32.totalorder %s54, %s55
      %p69 = scmp.eq.s32.totalorder %s26, 1
      %p70 = por %p68, %p69
      %p72 = scmp.ne.s32.totalorder %s55, %s71
      %p73 = scmp.eq.s32.totalorder %s26, 0
      %p74 = por %p72, %p73
      %s76 = sadd.s32 %s75, 1
      %p79 = scmp.eq.s32.totalorder %s20, 1
      %p80 = scmp.ne.s32.totalorder %s75, %s77
      %p81 = scmp.eq.s32.totalorder %s20, 0
      %p82 = por %p80, %p81
      %p83 = scmp.ne.s32.totalorder %s75, %s77
      %p84 = scmp.eq.s32.totalorder %s25, 1
      %p85 = por %p83, %p84
      %p86 = scmp.ne.s32.totalorder %s77, %s78
      %p87 = scmp.eq.s32.totalorder %s25, 0
      %p88 = por %p86, %p87
      %p89 = scmp.ne.s32.totalorder %s77, %s78
      %p90 = scmp.eq.s32.totalorder %s26, 1
      %p91 = por %p89, %p90
      %p93 = scmp.ne.s32.totalorder %s78, %s92
      %p94 = scmp.eq.s32.totalorder %s26, 0
      %p95 = por %p93, %p94
      %s97 = sadd.s32 %s96, 1
      %p100 = scmp.eq.s32.totalorder %s20, 1
      %p101 = scmp.ne.s32.totalorder %s96, %s98
      %p102 = scmp.eq.s32.totalorder %s20, 0
      %p103 = por %p101, %p102
      %p104 = scmp.ne.s32.totalorder %s96, %s98
      %p105 = scmp.eq.s32.totalorder %s25, 1
      %p106 = por %p104, %p105
      %p107 = scmp.ne.s32.totalorder %s98, %s99
      %p108 = scmp.eq.s32.totalorder %s25, 0
      %p109 = por %p107, %p108
      %p110 = scmp.ne.s32.totalorder %s98, %s99
      %p111 = scmp.eq.s32.totalorder %s26, 1
      %p112 = por %p110, %p111
      %p114 = scmp.ne.s32.totalorder %s99, %s113
      %p115 = scmp.eq.s32.totalorder %s26, 0
      %p116 = por %p114, %p115
      %s118 = sadd.s32 %s117, 1
      %p121 = scmp.eq.s32.totalorder %s20, 1
      %p122 = scmp.ne.s32.totalorder %s117, %s119
      %p123 = scmp.eq.s32.totalorder %s20, 0
      %p124 = por %p122, %p123
      %p125 = scmp.ne.s32.totalorder %s117, %s119
      %p126 = scmp.eq.s32.totalorder %s25, 1
      %p127 = por %p125, %p126
      %p128 = scmp.ne.s32.totalorder %s119, %s120
      %p129 = scmp.eq.s32.totalorder %s25, 0
      %p130 = por %p128, %p129
      %p131 = scmp.ne.s32.totalorder %s119, %s120
      %p132 = scmp.eq.s32.totalorder %s26, 1
      %p133 = por %p131, %p132
      %p135 = scmp.ne.s32.totalorder %s120, %s134
      %p136 = scmp.eq.s32.totalorder %s26, 0
      %p137 = por %p135, %p136
      %s139 = sadd.s32 %s138, 1
      %p142 = scmp.eq.s32.totalorder %s20, 1
      %p143 = scmp.ne.s32.totalorder %s138, %s140
      %p144 = scmp.eq.s32.totalorder %s20, 0
      %p145 = por %p143, %p144
      %p146 = scmp.ne.s32.totalorder %s138, %s140
      %p147 = scmp.eq.s32.totalorder %s25, 1
      %p148 = por %p146, %p147
      %p149 = scmp.ne.s32.totalorder %s140, %s141
      %p150 = scmp.eq.s32.totalorder %s25, 0
      %p151 = por %p149, %p150
      %p152 = scmp.ne.s32.totalorder %s140, %s141
      %p153 = scmp.eq.s32.totalorder %s26, 1
      %p154 = por %p152, %p153
      %p156 = scmp.ne.s32.totalorder %s141, %s155
      %p157 = scmp.eq.s32.totalorder %s26, 0
      %p158 = por %p156, %p157
      %s160 = sadd.s32 %s159, 1
      %p163 = scmp.eq.s32.totalorder %s20, 1
      %p164 = scmp.ne.s32.totalorder %s159, %s161
      %p165 = scmp.eq.s32.totalorder %s20, 0
      %p166 = por %p164, %p165
      %p167 = scmp.ne.s32.totalorder %s159, %s161
      %p168 = scmp.eq.s32.totalorder %s25, 1
      %p169 = por %p167, %p168
      %p170 = scmp.ne.s32.totalorder %s161, %s162
      %p171 = scmp.eq.s32.totalorder %s25, 0
      %p172 = por %p170, %p171
      %p173 = scmp.ne.s32.totalorder %s161, %s162
      %p174 = scmp.eq.s32.totalorder %s26, 1
      %p175 = por %p173, %p174
      %p177 = scmp.ne.s32.totalorder %s162, %s176
      %p178 = scmp.eq.s32.totalorder %s26, 0
      %p179 = por %p177, %p178
      %s180 = ssub.s32 %s20, %s27
      %p181 = scmp.eq.s32.totalorder %s180, 0
      %s183 = sadd.s32 %s182, 1
      %s184 = scalar_select %p181, %s182, %s183
      %p187 = pneg %p181
      %p188 = scmp.eq.s32.totalorder %s20, 1
      %p189 = por %p187, %p188
      %p190 = scmp.ne.s32.totalorder %s182, %s185
      %p191 = scmp.eq.s32.totalorder %s20, 0
      %p192 = por %p190, %p191
      %p193 = scmp.ne.s32.totalorder %s182, %s185
      %p194 = scmp.eq.s32.totalorder %s25, 1
      %p195 = por %p193, %p194
      %p196 = scmp.ne.s32.totalorder %s185, %s186
      %p197 = scmp.eq.s32.totalorder %s25, 0
      %p198 = por %p196, %p197
      %p199 = scmp.ne.s32.totalorder %s185, %s186
      %p200 = scmp.eq.s32.totalorder %s26, 1
      %p201 = por %p199, %p200
      %p203 = scmp.ne.s32.totalorder %s186, %s202
      %p204 = scmp.eq.s32.totalorder %s26, 0
      %p205 = por %p203, %p204
      %p206 = scmp.le.s32.totalorder 1, %s20
      %p207 = scmp.lt.s32.totalorder %s20, 3
      %p208 = pnand %p206, %p207
      %p209 = pneg %p208
      // Predicated region
      $region9: #{tpu_custom_call.1} parent=5 // pred_check
        _
      $region10: #{tpu_custom_call.1} parent=5 // pred_check_branch
        %211 = sbr.rel (%p208) target = $region12
      $region11: #{tpu_custom_call.1} parent=5 // pred_region
        %s212 = ssub.s32 %s20, 1
        // Predicated region
        $region13: #{tpu_custom_call.1} parent=11 // pred_check
          %p213 = pneg %p41
        $region14: #{tpu_custom_call.1} parent=11 // pred_check_branch
          %215 = sbr.rel (%p213) target = $region16
        $region15: #{tpu_custom_call.1} parent=11 // pred_region
          %217 = vsyncadd [#allocation6], 0
          %s219 = sshll.u32 %s0, 4
          %s220 = int_to_ptr.vmem [resolvable:$true] %s219
          %222 = dma.vmem_to_smem %s220, 16, [#allocation3], [#allocation6]
        $region16: #{tpu_custom_call.1} parent=11 // pred_fallthru
          _
        // Predicated region
        $region17: #{tpu_custom_call.1} parent=11 // pred_check
          %p223 = pneg %p88
        $region18: #{tpu_custom_call.1} parent=11 // pred_check_branch
          %225 = sbr.rel (%p223) target = $region20
        $region19: #{tpu_custom_call.1} parent=11 // pred_region
          _
        $region20: #{tpu_custom_call.1} parent=11 // pred_fallthru
          _
        // Predicated region
        $region21: #{tpu_custom_call.1} parent=11 // pred_check
          %p226 = pneg %p109
        $region22: #{tpu_custom_call.1} parent=11 // pred_check_branch
          %228 = sbr.rel (%p226) target = $region24
        $region23: #{tpu_custom_call.1} parent=11 // pred_region
          _
        $region24: #{tpu_custom_call.1} parent=11 // pred_fallthru
          _
        // Predicated region
        $region25: #{tpu_custom_call.1} parent=11 // pred_check
          %p229 = pneg %p130
        $region26: #{tpu_custom_call.1} parent=11 // pred_check_branch
          %231 = sbr.rel (%p229) target = $region28
        $region27: #{tpu_custom_call.1} parent=11 // pred_region
          _
        $region28: #{tpu_custom_call.1} parent=11 // pred_fallthru
          _
        // Predicated region
        $region29: #{tpu_custom_call.1} parent=11 // pred_check
          %p232 = pneg %p151
        $region30: #{tpu_custom_call.1} parent=11 // pred_check_branch
          %234 = sbr.rel (%p232) target = $region32
        $region31: #{tpu_custom_call.1} parent=11 // pred_region
          _
        $region32: #{tpu_custom_call.1} parent=11 // pred_fallthru
          _
        // Predicated region
        $region33: #{tpu_custom_call.1} parent=11 // pred_check
          %p235 = pneg %p172
        $region34: #{tpu_custom_call.1} parent=11 // pred_check_branch
          %237 = sbr.rel (%p235) target = $region36
        $region35: #{tpu_custom_call.1} parent=11 // pred_region
          _
        $region36: #{tpu_custom_call.1} parent=11 // pred_fallthru
          _
      $region12: #{tpu_custom_call.1} parent=5 // pred_fallthru
        _
      %p238 = scmp.lt.s32.totalorder %s20, 2
      // Predicated region
      $region37: #{tpu_custom_call.1} parent=5 // pred_check
        %p239 = pneg %p238
      $region38: #{tpu_custom_call.1} parent=5 // pred_check_branch
        %241 = sbr.rel (%p239) target = $region40
      $region39: #{tpu_custom_call.1} parent=5 // pred_region
        // Predicated region
        $region41: #{tpu_custom_call.1} parent=39 // pred_check
          %p242 = pneg %p61
        $region42: #{tpu_custom_call.1} parent=39 // pred_check_branch
          %244 = sbr.rel (%p242) target = $region44
        $region43: #{tpu_custom_call.1} parent=39 // pred_region
          %s245 = sand.u32 %s51, 1
          %s246 = scalar_lea.sflag [#allocation4], %s245
          %s247 = sand.u32 %s51, 1
          %s248 = smul.addr %s247, 160
          %s249 = scalar_lea.vmem [#allocation7], %s248
          %s250 = smul.u32 4, %s20
          %252 = vsyncadd %s246, 0
          %s253 = smul.addr %s250, 8
          %s254 = scalar_lea.hbm %s1, %s253
          %s255 = sshll.u32 %s254, 4
          %s256 = int_to_ptr.hbm [resolvable:$true] %s255
          %s257 = sshll.u32 %s249, 4
          %s258 = int_to_ptr.vmem [resolvable:$true] %s257
          %263 = dma.hbm_to_vmem [thread:$0]  %s256, 2560, %s258, %s246, 1024, 512, 32
        $region44: #{tpu_custom_call.1} parent=39 // pred_fallthru
          _
      $region40: #{tpu_custom_call.1} parent=5 // pred_fallthru
        _
      %p264 = scmp.le.s32.totalorder 1, %s20
      %p265 = scmp.lt.s32.totalorder %s20, 3
      %p266 = pnand %p264, %p265
      %p267 = pneg %p266
      // Predicated region
      $region45: #{tpu_custom_call.1} parent=5 // pred_check
        _
      $region46: #{tpu_custom_call.1} parent=5 // pred_check_branch
        %269 = sbr.rel (%p266) target = $region48
      $region47: #{tpu_custom_call.1} parent=5 // pred_region
        %s270 = ssub.s32 %s20, 1
        // Predicated region
        $region49: #{tpu_custom_call.1} parent=47 // pred_check
          %p271 = pneg %p41
        $region50: #{tpu_custom_call.1} parent=47 // pred_check_branch
          %273 = sbr.rel (%p271) target = $region52
        $region51: #{tpu_custom_call.1} parent=47 // pred_region
          %275 = dma.done [#allocation6], 16
        $region52: #{tpu_custom_call.1} parent=47 // pred_fallthru
          _
        %s276 = sand.u32 %s54, 1
        %s277 = scalar_lea.sflag [#allocation4], %s276
        %s278 = sand.u32 %s54, 1
        %s279 = smul.addr %s278, 160
        %s280 = scalar_lea.vmem [#allocation7], %s279
        // Predicated region
        $region53: #{tpu_custom_call.1} parent=47 // pred_check
          %p281 = pneg %p67
        $region54: #{tpu_custom_call.1} parent=47 // pred_check_branch
          %283 = sbr.rel (%p281) target = $region56
        $region55: #{tpu_custom_call.1} parent=47 // pred_region
          %285 = dma.done %s277, 2560
        $region56: #{tpu_custom_call.1} parent=47 // pred_fallthru
          _
        %286 = sfence
        %p287 = pneg %p41
        %p288 = pneg %p38
        %s289 = sand.u32 %s54, 1
        %s290 = scalar_lea.sflag [#allocation4], %s289
        %s291 = sand.u32 %s54, 1
        %s292 = smul.addr %s291, 160
        %s293 = scalar_lea.vmem [#allocation7], %s292
        %p294 = pneg %p67
        %p295 = pneg %p64
        %p296 = pneg %p88
        %p297 = pneg %p85
        %p298 = pneg %p109
        %p299 = pneg %p106
        %p300 = pneg %p130
        %p301 = pneg %p127
        %p302 = pneg %p151
        %p303 = pneg %p148
        %p304 = pneg %p172
        %p305 = pneg %p169
        %p306 = pneg %p198
        %p307 = pneg %p195
        %s308 = sand.u32 %s185, 1
        %s309 = scalar_lea.sflag [#allocation5], %s308
        %s310 = sand.u32 %s185, 1
        %s311 = smul.addr %s310, 160
        %s312 = scalar_lea.vmem [#allocation8], %s311
        %s313 = smul.u32 4, %s25
        %s314 = smul.u32 4, %s25
        %s316 = sld [smem:[#allocation3]]
        %s317 = sld [smem:[#allocation3 + $0x1]]
        %v318 = vld [vmem:[%s280] sm:$0xff]
        %v319 = vld [vmem:[%s280 + $0x8] sm:$0xff]
        %v320 = vld [vmem:[%s280 + $0x10] sm:$0xff]
        %v321 = vld [vmem:[%s280 + $0x18] sm:$0xff]
        %v322 = vld [vmem:[%s280 + $0x20] sm:$0xff]
        %v323 = vld [vmem:[%s280 + $0x28] sm:$0xff]
        %v324 = vld [vmem:[%s280 + $0x30] sm:$0xff]
        %v325 = vld [vmem:[%s280 + $0x38] sm:$0xff]
        %v326 = vld [vmem:[%s280 + $0x40] sm:$0xff]
        %v327 = vld [vmem:[%s280 + $0x48] sm:$0xff]
        %v328 = vld [vmem:[%s280 + $0x50] sm:$0xff]
        %v329 = vld [vmem:[%s280 + $0x58] sm:$0xff]
        %v330 = vld [vmem:[%s280 + $0x60] sm:$0xff]
        %v331 = vld [vmem:[%s280 + $0x68] sm:$0xff]
        %v332 = vld [vmem:[%s280 + $0x70] sm:$0xff]
        %v333 = vld [vmem:[%s280 + $0x78] sm:$0xff]
        %v334 = vld [vmem:[%s280 + $0x80] sm:$0xff]
        %v335 = vld [vmem:[%s280 + $0x88] sm:$0xff]
        %v336 = vld [vmem:[%s280 + $0x90] sm:$0xff]
        %v337 = vld [vmem:[%s280 + $0x98] sm:$0xff]
        %v338 = vld [vmem:[%s2] sm:$0xf]
        %v339 = vpack.c.bf16 %v322, %v318
        %v340 = vpack.c.bf16 %v323, %v319
        %v341 = vpack.c.bf16 %v324, %v320
        %v342 = vpack.c.bf16 %v325, %v321
        %v343 = vpack.c.bf16 %v330, %v326
        %v344 = vpack.c.bf16 %v331, %v327
        %v345 = vpack.c.bf16 %v332, %v328
        %v346 = vpack.c.bf16 %v333, %v329
        %v347 = vpack.c.bf16 %v334, %v334
        %v348 = vpack.c.bf16 %v335, %v335
        %v349 = vpack.c.bf16 %v336, %v336
        %v350 = vpack.c.bf16 %v337, %v337
        %v351 = vld [vmem:[%s3] sm:$0xff]
        %353 = vset.pattern.permute.xlu0 0
        %354 = vperm.xlu0 %353, %v351
        %v355 = vpop.permute.xlu0 %354
        %vm357 = vcmask 326656
        %v359 = vsel %vm357, %v338, 0
        %vm361 = vcmask 1043456
        %v363 = vsel %vm361, %v347, 0
        %v366 = vsel %vm361, %v348, 0
        %v369 = vsel %vm361, %v349, 0
        %v372 = vsel %vm361, %v350, 0
        %374 = vmatpush.bf16.msra.mxu0 0
        %375 = vmatpush.bf16.msra.mxu0 0
        %376 = vmatpush.bf16.msra.mxu0 0
        %377 = vmatpush.bf16.msra.mxu0 0
        %378 = vmatpush.bf16.msra.mxu0 0
        %379 = vmatpush.bf16.msra.mxu0 %v363
        %380 = vmatpush.bf16.msra.mxu0 %v343
        %381 = vmatpush.bf16.msra.mxu0 %v339
        %382 = vmatmul.bf16.gmra.mxu0 %v359
        %v383 = vpop.f32.mrf.mxu0
        %v384 = vadd.f32 %v355, %v383
        %v385 = vpop.f32.mrf.mxu0
        %386 = vdwg.mxu0
        %387 = vmatpush.bf16.msra.mxu0 0
        %388 = vmatpush.bf16.msra.mxu0 0
        %389 = vmatpush.bf16.msra.mxu0 0
        %390 = vmatpush.bf16.msra.mxu0 0
        %391 = vmatpush.bf16.msra.mxu0 0
        %392 = vmatpush.bf16.msra.mxu0 %v366
        %393 = vmatpush.bf16.msra.mxu0 %v344
        %394 = vmatpush.bf16.msra.mxu0 %v340
        %395 = vmatmul.bf16.gmra.mxu0 %v359
        %v396 = vpop.f32.mrf.mxu0
        %v397 = vadd.f32 %v355, %v396
        %v398 = vpop.f32.mrf.mxu0
        %399 = vdwg.mxu0
        %400 = vmatpush.bf16.msra.mxu0 0
        %401 = vmatpush.bf16.msra.mxu0 0
        %402 = vmatpush.bf16.msra.mxu0 0
        %403 = vmatpush.bf16.msra.mxu0 0
        %404 = vmatpush.bf16.msra.mxu0 0
        %405 = vmatpush.bf16.msra.mxu0 %v369
        %406 = vmatpush.bf16.msra.mxu0 %v345
        %407 = vmatpush.bf16.msra.mxu0 %v341
        %408 = vmatmul.bf16.gmra.mxu0 %v359
        %v409 = vpop.f32.mrf.mxu0
        %v410 = vadd.f32 %v355, %v409
        %v411 = vpop.f32.mrf.mxu0
        %412 = vdwg.mxu0
        %413 = vmatpush.bf16.msra.mxu0 0
        %414 = vmatpush.bf16.msra.mxu0 0
        %415 = vmatpush.bf16.msra.mxu0 0
        %416 = vmatpush.bf16.msra.mxu0 0
        %417 = vmatpush.bf16.msra.mxu0 0
        %418 = vmatpush.bf16.msra.mxu0 %v372
        %419 = vmatpush.bf16.msra.mxu0 %v346
        %420 = vmatpush.bf16.msra.mxu0 %v342
        %421 = vmatmul.bf16.gmra.mxu0 %v359
        %v422 = vpop.f32.mrf.mxu0
        %v423 = vadd.f32 %v355, %v422
        %v424 = vpop.f32.mrf.mxu0
        %425 = vdwg.mxu0
        %vm426 = vcmp.gt.f32.partialorder %v384, 0.0
        %vm427 = vcmp.gt.f32.partialorder %v397, 0.0
        %vm428 = vcmp.gt.f32.partialorder %v410, 0.0
        %vm429 = vcmp.gt.f32.partialorder %v423, 0.0
        %v430 = vstv %s316
        %v431 = vmul.f32 %v430, %v384
        %v432 = vmul.f32 %v430, %v397
        %v433 = vmul.f32 %v430, %v410
        %v434 = vmul.f32 %v430, %v423
        %v435 = vsel %vm426, %v384, %v431
        %v436 = vsel %vm427, %v397, %v432
        %v437 = vsel %vm428, %v410, %v433
        %v438 = vsel %vm429, %v423, %v434
        %v439 = vlaneseq
        %v440 = vand.u32 %v439, 127
        %v441 = vadd.s32 %v440, 128
        %v442 = vadd.s32 %v440, 256
        %v443 = vadd.s32 %v440, 384
        %v444 = vand.u32 %v440, 127
        %v445 = vand.u32 %v441, 127
        %v446 = vand.u32 %v442, 127
        %v447 = vand.u32 %v443, 127
        %448 = vrot.lane.b32.xlu0 %v435, 16
        %v449 = vpop.permute.xlu0 %448
        %450 = vrot.lane.b32.xlu0 %v436, 16
        %v451 = vpop.permute.xlu0 %450
        %452 = vrot.lane.b32.xlu0 %v437, 16
        %v453 = vpop.permute.xlu0 %452
        %454 = vrot.lane.b32.xlu0 %v438, 16
        %v455 = vpop.permute.xlu0 %454
        %vm456 = vcmp.lt.s32.totalorder %v440, 16
        %v457 = vsel %vm456, %v453, %v455
        %v458 = vsel %vm456, %v451, %v453
        %v459 = vsel %vm456, %v449, %v451
        %v460 = vsel %vm456, %v455, %v449
        %vm461 = vcmp.ge.s32.totalorder %v444, 16
        %vm462 = vcmp.ge.s32.totalorder %v445, 16
        %vm463 = vcmp.ge.s32.totalorder %v446, 16
        %vm464 = vcmp.ge.s32.totalorder %v447, 16
        %v465 = vsel %vm461, %v460, 0.0
        %v466 = vsel %vm462, %v459, 0.0
        %v467 = vsel %vm463, %v458, 0.0
        %v468 = vsel %vm464, %v457, 0.0
        %469 = vst [vmem:[#allocation2] sm:$0xff] %v465
        %470 = vst [vmem:[#allocation2 + $0x8] sm:$0xff] %v466
        %471 = vst [vmem:[#allocation2 + $0x10] sm:$0xff] %v467
        %472 = vst [vmem:[#allocation2 + $0x18] sm:$0xff] %v468
        %473 = vrot.lane.b32.xlu0 %v435, 8
        %v474 = vpop.permute.xlu0 %473
        %475 = vrot.lane.b32.xlu0 %v436, 8
        %v476 = vpop.permute.xlu0 %475
        %477 = vrot.lane.b32.xlu0 %v437, 8
        %v478 = vpop.permute.xlu0 %477
        %479 = vrot.lane.b32.xlu0 %v438, 8
        %v480 = vpop.permute.xlu0 %479
        %vm481 = vcmp.lt.s32.totalorder %v440, 8
        %v482 = vsel %vm481, %v478, %v480
        %v483 = vsel %vm481, %v476, %v478
        %v484 = vsel %vm481, %v474, %v476
        %v485 = vsel %vm481, %v480, %v474
        %vm486 = vcmp.ge.s32.totalorder %v444, 8
        %vm487 = vcmp.ge.s32.totalorder %v445, 8
        %vm488 = vcmp.ge.s32.totalorder %v446, 8
        %vm489 = vcmp.ge.s32.totalorder %v447, 8
        %v490 = vsel %vm486, %v485, 0.0
        %v491 = vsel %vm487, %v484, 0.0
        %v492 = vsel %vm488, %v483, 0.0
        %v493 = vsel %vm489, %v482, 0.0
        %494 = vst [vmem:[#allocation2 + $0x20] sm:$0xff] %v490
        %495 = vst [vmem:[#allocation2 + $0x28] sm:$0xff] %v491
        %496 = vst [vmem:[#allocation2 + $0x30] sm:$0xff] %v492
        %497 = vst [vmem:[#allocation2 + $0x38] sm:$0xff] %v493
        %498 = vrot.lane.b32.xlu0 %v435, 4
        %v499 = vpop.permute.xlu0 %498
        %500 = vrot.lane.b32.xlu0 %v436, 4
        %v501 = vpop.permute.xlu0 %500
        %502 = vrot.lane.b32.xlu0 %v437, 4
        %v503 = vpop.permute.xlu0 %502
        %504 = vrot.lane.b32.xlu0 %v438, 4
        %v505 = vpop.permute.xlu0 %504
        %vm506 = vcmp.lt.s32.totalorder %v440, 4
        %v507 = vsel %vm506, %v503, %v505
        %v508 = vsel %vm506, %v501, %v503
        %v509 = vsel %vm506, %v499, %v501
        %v510 = vsel %vm506, %v505, %v499
        %vm511 = vcmp.ge.s32.totalorder %v444, 4
        %vm512 = vcmp.ge.s32.totalorder %v445, 4
        %vm513 = vcmp.ge.s32.totalorder %v446, 4
        %vm514 = vcmp.ge.s32.totalorder %v447, 4
        %v515 = vsel %vm511, %v510, 0.0
        %v516 = vsel %vm512, %v509, 0.0
        %v517 = vsel %vm513, %v508, 0.0
        %v518 = vsel %vm514, %v507, 0.0
        %519 = vst [vmem:[#allocation2 + $0x40] sm:$0xff] %v515
        %520 = vst [vmem:[#allocation2 + $0x48] sm:$0xff] %v516
        %521 = vst [vmem:[#allocation2 + $0x50] sm:$0xff] %v517
        %522 = vst [vmem:[#allocation2 + $0x58] sm:$0xff] %v518
        %523 = vrot.lane.b32.xlu0 %v435, 2
        %v524 = vpop.permute.xlu0 %523
        %525 = vrot.lane.b32.xlu0 %v436, 2
        %v526 = vpop.permute.xlu0 %525
        %527 = vrot.lane.b32.xlu0 %v437, 2
        %v528 = vpop.permute.xlu0 %527
        %529 = vrot.lane.b32.xlu0 %v438, 2
        %v530 = vpop.permute.xlu0 %529
        %vm531 = vcmp.lt.s32.totalorder %v440, 2
        %v532 = vsel %vm531, %v528, %v530
        %v533 = vsel %vm531, %v526, %v528
        %v534 = vsel %vm531, %v524, %v526
        %v535 = vsel %vm531, %v530, %v524
        %vm536 = vcmp.ge.s32.totalorder %v444, 2
        %vm537 = vcmp.ge.s32.totalorder %v445, 2
        %vm538 = vcmp.ge.s32.totalorder %v446, 2
        %vm539 = vcmp.ge.s32.totalorder %v447, 2
        %v540 = vsel %vm536, %v535, 0.0
        %v541 = vsel %vm537, %v534, 0.0
        %v542 = vsel %vm538, %v533, 0.0
        %v543 = vsel %vm539, %v532, 0.0
        %544 = vst [vmem:[#allocation2 + $0x60] sm:$0xff] %v540
        %545 = vst [vmem:[#allocation2 + $0x68] sm:$0xff] %v541
        %546 = vst [vmem:[#allocation2 + $0x70] sm:$0xff] %v542
        %547 = vst [vmem:[#allocation2 + $0x78] sm:$0xff] %v543
        %548 = vrot.lane.b32.xlu0 %v435, 1
        %v549 = vpop.permute.xlu0 %548
        %550 = vrot.lane.b32.xlu0 %v436, 1
        %v551 = vpop.permute.xlu0 %550
        %552 = vrot.lane.b32.xlu0 %v437, 1
        %v553 = vpop.permute.xlu0 %552
        %554 = vrot.lane.b32.xlu0 %v438, 1
        %v555 = vpop.permute.xlu0 %554
        %vm556 = vcmp.lt.s32.totalorder %v440, 1
        %v557 = vsel %vm556, %v553, %v555
        %v558 = vsel %vm556, %v551, %v553
        %v559 = vsel %vm556, %v549, %v551
        %v560 = vsel %vm556, %v555, %v549
        %vm561 = vcmp.ge.s32.totalorder %v444, 1
        %vm562 = vcmp.ge.s32.totalorder %v445, 1
        %vm563 = vcmp.ge.s32.totalorder %v446, 1
        %vm564 = vcmp.ge.s32.totalorder %v447, 1
        %v565 = vsel %vm561, %v560, 0.0
        %v566 = vsel %vm562, %v559, 0.0
        %v567 = vsel %vm563, %v558, 0.0
        %v568 = vsel %vm564, %v557, 0.0
        %569 = vst [vmem:[#allocation2 + $0x80] sm:$0xff] %v565
        %570 = vst [vmem:[#allocation2 + $0x88] sm:$0xff] %v566
        %571 = vst [vmem:[#allocation2 + $0x90] sm:$0xff] %v567
        %572 = vst [vmem:[#allocation2 + $0x98] sm:$0xff] %v568
        %573 = vst [vmem:[#allocation2 + $0xa0] sm:$0xff] %v435
        %574 = vst [vmem:[#allocation2 + $0xa8] sm:$0xff] %v436
        %575 = vst [vmem:[#allocation2 + $0xb0] sm:$0xff] %v437
        %576 = vst [vmem:[#allocation2 + $0xb8] sm:$0xff] %v438
        %577 = vrot.lane.b32.xlu0 %v435, 127
        %v578 = vpop.permute.xlu0 %577
        %579 = vrot.lane.b32.xlu0 %v436, 127
        %v580 = vpop.permute.xlu0 %579
        %581 = vrot.lane.b32.xlu0 %v437, 127
        %v582 = vpop.permute.xlu0 %581
        %583 = vrot.lane.b32.xlu0 %v438, 127
        %v584 = vpop.permute.xlu0 %583
        %vm585 = vcmp.lt.s32.totalorder %v440, 127
        %v586 = vsel %vm585, %v582, %v584
        %v587 = vsel %vm585, %v580, %v582
        %v588 = vsel %vm585, %v578, %v580
        %v589 = vsel %vm585, %v584, %v578
        %vm590 = vcmp.lt.s32.totalorder %v444, 127
        %vm591 = vcmp.lt.s32.totalorder %v445, 127
        %vm592 = vcmp.lt.s32.totalorder %v446, 127
        %vm593 = vcmp.lt.s32.totalorder %v447, 127
        %v594 = vsel %vm590, %v588, 0.0
        %v595 = vsel %vm591, %v587, 0.0
        %v596 = vsel %vm592, %v586, 0.0
        %v597 = vsel %vm593, %v589, 0.0
        %598 = vst [vmem:[#allocation2 + $0xc0] sm:$0xff] %v594
        %599 = vst [vmem:[#allocation2 + $0xc8] sm:$0xff] %v595
        %600 = vst [vmem:[#allocation2 + $0xd0] sm:$0xff] %v596
        %601 = vst [vmem:[#allocation2 + $0xd8] sm:$0xff] %v597
        %602 = vrot.lane.b32.xlu0 %v435, 126
        %v603 = vpop.permute.xlu0 %602
        %604 = vrot.lane.b32.xlu0 %v436, 126
        %v605 = vpop.permute.xlu0 %604
        %606 = vrot.lane.b32.xlu0 %v437, 126
        %v607 = vpop.permute.xlu0 %606
        %608 = vrot.lane.b32.xlu0 %v438, 126
        %v609 = vpop.permute.xlu0 %608
        %vm610 = vcmp.lt.s32.totalorder %v440, 126
        %v611 = vsel %vm610, %v607, %v609
        %v612 = vsel %vm610, %v605, %v607
        %v613 = vsel %vm610, %v603, %v605
        %v614 = vsel %vm610, %v609, %v603
        %vm615 = vcmp.lt.s32.totalorder %v444, 126
        %vm616 = vcmp.lt.s32.totalorder %v445, 126
        %vm617 = vcmp.lt.s32.totalorder %v446, 126
        %vm618 = vcmp.lt.s32.totalorder %v447, 126
        %v619 = vsel %vm615, %v613, 0.0
        %v620 = vsel %vm616, %v612, 0.0
        %v621 = vsel %vm617, %v611, 0.0
        %v622 = vsel %vm618, %v614, 0.0
        %623 = vst [vmem:[#allocation2 + $0xe0] sm:$0xff] %v619
        %624 = vst [vmem:[#allocation2 + $0xe8] sm:$0xff] %v620
        %625 = vst [vmem:[#allocation2 + $0xf0] sm:$0xff] %v621
        %626 = vst [vmem:[#allocation2 + $0xf8] sm:$0xff] %v622
        %627 = vrot.lane.b32.xlu0 %v435, 124
        %v628 = vpop.permute.xlu0 %627
        %629 = vrot.lane.b32.xlu0 %v436, 124
        %v630 = vpop.permute.xlu0 %629
        %631 = vrot.lane.b32.xlu0 %v437, 124
        %v632 = vpop.permute.xlu0 %631
        %633 = vrot.lane.b32.xlu0 %v438, 124
        %v634 = vpop.permute.xlu0 %633
        %vm635 = vcmp.lt.s32.totalorder %v440, 124
        %v636 = vsel %vm635, %v632, %v634
        %v637 = vsel %vm635, %v630, %v632
        %v638 = vsel %vm635, %v628, %v630
        %v639 = vsel %vm635, %v634, %v628
        %vm640 = vcmp.lt.s32.totalorder %v444, 124
        %vm641 = vcmp.lt.s32.totalorder %v445, 124
        %vm642 = vcmp.lt.s32.totalorder %v446, 124
        %vm643 = vcmp.lt.s32.totalorder %v447, 124
        %v644 = vsel %vm640, %v638, 0.0
        %v645 = vsel %vm641, %v637, 0.0
        %v646 = vsel %vm642, %v636, 0.0
        %v647 = vsel %vm643, %v639, 0.0
        %648 = vst [vmem:[#allocation2 + $0x100] sm:$0xff] %v644
        %649 = vst [vmem:[#allocation2 + $0x108] sm:$0xff] %v645
        %650 = vst [vmem:[#allocation2 + $0x110] sm:$0xff] %v646
        %651 = vst [vmem:[#allocation2 + $0x118] sm:$0xff] %v647
        %652 = vrot.lane.b32.xlu0 %v435, 120
        %v653 = vpop.permute.xlu0 %652
        %654 = vrot.lane.b32.xlu0 %v436, 120
        %v655 = vpop.permute.xlu0 %654
        %656 = vrot.lane.b32.xlu0 %v437, 120
        %v657 = vpop.permute.xlu0 %656
        %658 = vrot.lane.b32.xlu0 %v438, 120
        %v659 = vpop.permute.xlu0 %658
        %vm660 = vcmp.lt.s32.totalorder %v440, 120
        %v661 = vsel %vm660, %v657, %v659
        %v662 = vsel %vm660, %v655, %v657
        %v663 = vsel %vm660, %v653, %v655
        %v664 = vsel %vm660, %v659, %v653
        %vm665 = vcmp.lt.s32.totalorder %v444, 120
        %vm666 = vcmp.lt.s32.totalorder %v445, 120
        %vm667 = vcmp.lt.s32.totalorder %v446, 120
        %vm668 = vcmp.lt.s32.totalorder %v447, 120
        %v669 = vsel %vm665, %v663, 0.0
        %v670 = vsel %vm666, %v662, 0.0
        %v671 = vsel %vm667, %v661, 0.0
        %v672 = vsel %vm668, %v664, 0.0
        %673 = vst [vmem:[#allocation2 + $0x120] sm:$0xff] %v669
        %674 = vst [vmem:[#allocation2 + $0x128] sm:$0xff] %v670
        %675 = vst [vmem:[#allocation2 + $0x130] sm:$0xff] %v671
        %676 = vst [vmem:[#allocation2 + $0x138] sm:$0xff] %v672
        %677 = vrot.lane.b32.xlu0 %v435, 112
        %v678 = vpop.permute.xlu0 %677
        %679 = vrot.lane.b32.xlu0 %v436, 112
        %v680 = vpop.permute.xlu0 %679
        %681 = vrot.lane.b32.xlu0 %v437, 112
        %v682 = vpop.permute.xlu0 %681
        %683 = vrot.lane.b32.xlu0 %v438, 112
        %v684 = vpop.permute.xlu0 %683
        %vm685 = vcmp.lt.s32.totalorder %v440, 112
        %v686 = vsel %vm685, %v682, %v684
        %v687 = vsel %vm685, %v680, %v682
        %v688 = vsel %vm685, %v678, %v680
        %v689 = vsel %vm685, %v684, %v678
        %vm690 = vcmp.lt.s32.totalorder %v444, 112
        %vm691 = vcmp.lt.s32.totalorder %v445, 112
        %vm692 = vcmp.lt.s32.totalorder %v446, 112
        %vm693 = vcmp.lt.s32.totalorder %v447, 112
        %v694 = vsel %vm690, %v688, 0.0
        %v695 = vsel %vm691, %v687, 0.0
        %v696 = vsel %vm692, %v686, 0.0
        %v697 = vsel %vm693, %v689, 0.0
        %698 = vst [vmem:[#allocation2 + $0x140] sm:$0xff] %v694
        %699 = vst [vmem:[#allocation2 + $0x148] sm:$0xff] %v695
        %700 = vst [vmem:[#allocation2 + $0x150] sm:$0xff] %v696
        %701 = vst [vmem:[#allocation2 + $0x158] sm:$0xff] %v697
        %702 = vst [vmem:[#allocation2 + $0x160] sm:$0xff] %v318
        %703 = vst [vmem:[#allocation2 + $0x168] sm:$0xff] %v319
        %704 = vst [vmem:[#allocation2 + $0x170] sm:$0xff] %v320
        %705 = vst [vmem:[#allocation2 + $0x178] sm:$0xff] %v321
        %706 = vst [vmem:[#allocation2 + $0x180] sm:$0xff] %v322
        %707 = vst [vmem:[#allocation2 + $0x188] sm:$0xff] %v323
        %708 = vst [vmem:[#allocation2 + $0x190] sm:$0xff] %v324
        %709 = vst [vmem:[#allocation2 + $0x198] sm:$0xff] %v325
        %710 = vst [vmem:[#allocation2 + $0x1a0] sm:$0xff] %v326
        %711 = vst [vmem:[#allocation2 + $0x1a8] sm:$0xff] %v327
        %712 = vst [vmem:[#allocation2 + $0x1b0] sm:$0xff] %v328
        %713 = vst [vmem:[#allocation2 + $0x1b8] sm:$0xff] %v329
        %714 = vst [vmem:[#allocation2 + $0x1c0] sm:$0xff] %v330
        %715 = vst [vmem:[#allocation2 + $0x1c8] sm:$0xff] %v331
        %716 = vst [vmem:[#allocation2 + $0x1d0] sm:$0xff] %v332
        %717 = vst [vmem:[#allocation2 + $0x1d8] sm:$0xff] %v333
        %718 = vst [vmem:[#allocation2 + $0x1e0] sm:$0xff] %v334
        %719 = vst [vmem:[#allocation2 + $0x1e8] sm:$0xff] %v335
        %720 = vst [vmem:[#allocation2 + $0x1f0] sm:$0xff] %v336
        %721 = vst [vmem:[#allocation2 + $0x1f8] sm:$0xff] %v337
        %v722 = vld [vmem:[%s4] sm:$0xf]
        %v723 = vld [vmem:[%s4 + $0x4] sm:$0xf]
        %v724 = vld [vmem:[%s4 + $0x8] sm:$0xf]
        %v725 = vld [vmem:[%s4 + $0xc] sm:$0xf]
        %v726 = vld [vmem:[%s4 + $0x10] sm:$0xf]
        %v727 = vld [vmem:[#allocation2] sm:$0xff]
        %v728 = vld [vmem:[#allocation2 + $0x8] sm:$0xff]
        %v729 = vld [vmem:[#allocation2 + $0x10] sm:$0xff]
        %v730 = vld [vmem:[#allocation2 + $0x18] sm:$0xff]
        %v731 = vld [vmem:[#allocation2 + $0x20] sm:$0xff]
        %v732 = vld [vmem:[#allocation2 + $0x28] sm:$0xff]
        %v733 = vld [vmem:[#allocation2 + $0x30] sm:$0xff]
        %v734 = vld [vmem:[#allocation2 + $0x38] sm:$0xff]
        %v735 = vld [vmem:[#allocation2 + $0x40] sm:$0xff]
        %v736 = vld [vmem:[#allocation2 + $0x48] sm:$0xff]
        %v737 = vld [vmem:[#allocation2 + $0x50] sm:$0xff]
        %v738 = vld [vmem:[#allocation2 + $0x58] sm:$0xff]
        %v739 = vld [vmem:[#allocation2 + $0x60] sm:$0xff]
        %v740 = vld [vmem:[#allocation2 + $0x68] sm:$0xff]
        %v741 = vld [vmem:[#allocation2 + $0x70] sm:$0xff]
        %v742 = vld [vmem:[#allocation2 + $0x78] sm:$0xff]
        %v743 = vld [vmem:[#allocation2 + $0x80] sm:$0xff]
        %v744 = vld [vmem:[#allocation2 + $0x88] sm:$0xff]
        %v745 = vld [vmem:[#allocation2 + $0x90] sm:$0xff]
        %v746 = vld [vmem:[#allocation2 + $0x98] sm:$0xff]
        %v747 = vld [vmem:[#allocation2 + $0xa0] sm:$0xff]
        %v748 = vld [vmem:[#allocation2 + $0xa8] sm:$0xff]
        %v749 = vld [vmem:[#allocation2 + $0xb0] sm:$0xff]
        %v750 = vld [vmem:[#allocation2 + $0xb8] sm:$0xff]
        %v751 = vld [vmem:[#allocation2 + $0xc0] sm:$0xff]
        %v752 = vld [vmem:[#allocation2 + $0xc8] sm:$0xff]
        %v753 = vld [vmem:[#allocation2 + $0xd0] sm:$0xff]
        %v754 = vld [vmem:[#allocation2 + $0xd8] sm:$0xff]
        %v755 = vld [vmem:[#allocation2 + $0xe0] sm:$0xff]
        %v756 = vld [vmem:[#allocation2 + $0xe8] sm:$0xff]
        %v757 = vld [vmem:[#allocation2 + $0xf0] sm:$0xff]
        %v758 = vld [vmem:[#allocation2 + $0xf8] sm:$0xff]
        %v759 = vld [vmem:[#allocation2 + $0x100] sm:$0xff]
        %v760 = vld [vmem:[#allocation2 + $0x108] sm:$0xff]
        %v761 = vld [vmem:[#allocation2 + $0x110] sm:$0xff]
        %v762 = vld [vmem:[#allocation2 + $0x118] sm:$0xff]
        %v763 = vld [vmem:[#allocation2 + $0x120] sm:$0xff]
        %v764 = vld [vmem:[#allocation2 + $0x128] sm:$0xff]
        %v765 = vld [vmem:[#allocation2 + $0x130] sm:$0xff]
        %v766 = vld [vmem:[#allocation2 + $0x138] sm:$0xff]
        %v767 = vld [vmem:[#allocation2 + $0x140] sm:$0xff]
        %v768 = vld [vmem:[#allocation2 + $0x148] sm:$0xff]
        %v769 = vld [vmem:[#allocation2 + $0x150] sm:$0xff]
        %v770 = vld [vmem:[#allocation2 + $0x158] sm:$0xff]
        %v771 = vld [vmem:[#allocation2 + $0x160] sm:$0xff]
        %v772 = vld [vmem:[#allocation2 + $0x168] sm:$0xff]
        %v773 = vld [vmem:[#allocation2 + $0x170] sm:$0xff]
        %v774 = vld [vmem:[#allocation2 + $0x178] sm:$0xff]
        %v775 = vld [vmem:[#allocation2 + $0x180] sm:$0xff]
        %v776 = vld [vmem:[#allocation2 + $0x188] sm:$0xff]
        %v777 = vld [vmem:[#allocation2 + $0x190] sm:$0xff]
        %v778 = vld [vmem:[#allocation2 + $0x198] sm:$0xff]
        %v779 = vld [vmem:[#allocation2 + $0x1a0] sm:$0xff]
        %v780 = vld [vmem:[#allocation2 + $0x1a8] sm:$0xff]
        %v781 = vld [vmem:[#allocation2 + $0x1b0] sm:$0xff]
        %v782 = vld [vmem:[#allocation2 + $0x1b8] sm:$0xff]
        %v783 = vld [vmem:[#allocation2 + $0x1c0] sm:$0xff]
        %v784 = vld [vmem:[#allocation2 + $0x1c8] sm:$0xff]
        %v785 = vld [vmem:[#allocation2 + $0x1d0] sm:$0xff]
        %v786 = vld [vmem:[#allocation2 + $0x1d8] sm:$0xff]
        %v787 = vld [vmem:[#allocation2 + $0x1e0] sm:$0xff]
        %v788 = vld [vmem:[#allocation2 + $0x1e8] sm:$0xff]
        %v789 = vld [vmem:[#allocation2 + $0x1f0] sm:$0xff]
        %v790 = vld [vmem:[#allocation2 + $0x1f8] sm:$0xff]
        %v791 = vpack.c.bf16 %v731, %v727
        %v792 = vpack.c.bf16 %v732, %v728
        %v793 = vpack.c.bf16 %v733, %v729
        %v794 = vpack.c.bf16 %v734, %v730
        %v795 = vpack.c.bf16 %v739, %v735
        %v796 = vpack.c.bf16 %v740, %v736
        %v797 = vpack.c.bf16 %v741, %v737
        %v798 = vpack.c.bf16 %v742, %v738
        %v799 = vpack.c.bf16 %v747, %v743
        %v800 = vpack.c.bf16 %v748, %v744
        %v801 = vpack.c.bf16 %v749, %v745
        %v802 = vpack.c.bf16 %v750, %v746
        %v803 = vpack.c.bf16 %v755, %v751
        %v804 = vpack.c.bf16 %v756, %v752
        %v805 = vpack.c.bf16 %v757, %v753
        %v806 = vpack.c.bf16 %v758, %v754
        %v807 = vpack.c.bf16 %v763, %v759
        %v808 = vpack.c.bf16 %v764, %v760
        %v809 = vpack.c.bf16 %v765, %v761
        %v810 = vpack.c.bf16 %v766, %v762
        %v811 = vpack.c.bf16 %v771, %v767
        %v812 = vpack.c.bf16 %v772, %v768
        %v813 = vpack.c.bf16 %v773, %v769
        %v814 = vpack.c.bf16 %v774, %v770
        %v815 = vpack.c.bf16 %v779, %v775
        %v816 = vpack.c.bf16 %v780, %v776
        %v817 = vpack.c.bf16 %v781, %v777
        %v818 = vpack.c.bf16 %v782, %v778
        %v819 = vpack.c.bf16 %v787, %v783
        %v820 = vpack.c.bf16 %v788, %v784
        %v821 = vpack.c.bf16 %v789, %v785
        %v822 = vpack.c.bf16 %v790, %v786
        %v823 = vld [vmem:[%s5] sm:$0xff]
        %v824 = vld [vmem:[%s5 + $0x8] sm:$0xff]
        %v825 = vld [vmem:[%s5 + $0x10] sm:$0xff]
        %v826 = vld [vmem:[%s5 + $0x18] sm:$0xff]
        %v827 = vld [vmem:[%s5 + $0x20] sm:$0xff]
        %829 = vset.pattern.permute.xlu0 0
        %830 = vperm.xlu0 %829, %v823
        %v831 = vpop.permute.xlu0 %830
        %834 = vset.pattern.permute.xlu0 0
        %835 = vperm.xlu0 %834, %v824
        %v836 = vpop.permute.xlu0 %835
        %839 = vset.pattern.permute.xlu0 0
        %840 = vperm.xlu0 %839, %v825
        %v841 = vpop.permute.xlu0 %840
        %844 = vset.pattern.permute.xlu0 0
        %845 = vperm.xlu0 %844, %v826
        %v846 = vpop.permute.xlu0 %845
        %849 = vset.pattern.permute.xlu0 0
        %850 = vperm.xlu0 %849, %v827
        %v851 = vpop.permute.xlu0 %850
        %v858 = vunpack.c.l.b16 %v722
        %v859 = vunpack.c.l.b16 %v723
        %v860 = vunpack.c.l.b16 %v724
        %v861 = vunpack.c.l.b16 %v725
        %v862 = vunpack.c.l.b16 %v726
        %v863 = vpack.c.b16 %v859, %v858
        %v864 = vpack.c.b16 %v861, %v860
        %v865 = vpack.c.b16 %v862, %v862
        %869 = vmatpush.bf16.msra.mxu0 %v819
        %870 = vmatpush.bf16.msra.mxu0 %v815
        %871 = vmatpush.bf16.msra.mxu0 %v811
        %872 = vmatpush.bf16.msra.mxu0 %v807
        %873 = vmatpush.bf16.msra.mxu0 %v803
        %874 = vmatpush.bf16.msra.mxu0 %v799
        %875 = vmatpush.bf16.msra.mxu0 %v795
        %876 = vmatpush.bf16.msra.mxu0 %v791
        %877 = vmatmul.bf16.gmra.mxu0 %v863
        %v878 = vpop.f32.mrf.mxu0
        %v879 = vadd.f32 %v831, %v878
        %v880 = vpop.f32.mrf.mxu0
        %v881 = vadd.f32 %v836, %v880
        %882 = vmatmul.bf16.gmra.mxu0 %v864
        %v883 = vpop.f32.mrf.mxu0
        %v884 = vadd.f32 %v841, %v883
        %v885 = vpop.f32.mrf.mxu0
        %v886 = vadd.f32 %v846, %v885
        %887 = vmatmul.bf16.gmra.mxu0 %v865
        %v888 = vpop.f32.mrf.mxu0
        %v889 = vadd.f32 %v851, %v888
        %v890 = vpop.f32.mrf.mxu0
        %891 = vdwg.mxu0
        %892 = vmatpush.bf16.msra.mxu0 %v820
        %893 = vmatpush.bf16.msra.mxu0 %v816
        %894 = vmatpush.bf16.msra.mxu0 %v812
        %895 = vmatpush.bf16.msra.mxu0 %v808
        %896 = vmatpush.bf16.msra.mxu0 %v804
        %897 = vmatpush.bf16.msra.mxu0 %v800
        %898 = vmatpush.bf16.msra.mxu0 %v796
        %899 = vmatpush.bf16.msra.mxu0 %v792
        %900 = vmatmul.bf16.gmra.mxu0 %v863
        %v901 = vpop.f32.mrf.mxu0
        %v902 = vadd.f32 %v831, %v901
        %v903 = vpop.f32.mrf.mxu0
        %v904 = vadd.f32 %v836, %v903
        %905 = vmatmul.bf16.gmra.mxu0 %v864
        %v906 = vpop.f32.mrf.mxu0
        %v907 = vadd.f32 %v841, %v906
        %v908 = vpop.f32.mrf.mxu0
        %v909 = vadd.f32 %v846, %v908
        %910 = vmatmul.bf16.gmra.mxu0 %v865
        %v911 = vpop.f32.mrf.mxu0
        %v912 = vadd.f32 %v851, %v911
        %v913 = vpop.f32.mrf.mxu0
        %914 = vdwg.mxu0
        %915 = vmatpush.bf16.msra.mxu0 %v821
        %916 = vmatpush.bf16.msra.mxu0 %v817
        %917 = vmatpush.bf16.msra.mxu0 %v813
        %918 = vmatpush.bf16.msra.mxu0 %v809
        %919 = vmatpush.bf16.msra.mxu0 %v805
        %920 = vmatpush.bf16.msra.mxu0 %v801
        %921 = vmatpush.bf16.msra.mxu0 %v797
        %922 = vmatpush.bf16.msra.mxu0 %v793
        %923 = vmatmul.bf16.gmra.mxu0 %v863
        %v924 = vpop.f32.mrf.mxu0
        %v925 = vadd.f32 %v831, %v924
        %v926 = vpop.f32.mrf.mxu0
        %v927 = vadd.f32 %v836, %v926
        %928 = vmatmul.bf16.gmra.mxu0 %v864
        %v929 = vpop.f32.mrf.mxu0
        %v930 = vadd.f32 %v841, %v929
        %v931 = vpop.f32.mrf.mxu0
        %v932 = vadd.f32 %v846, %v931
        %933 = vmatmul.bf16.gmra.mxu0 %v865
        %v934 = vpop.f32.mrf.mxu0
        %v935 = vadd.f32 %v851, %v934
        %v936 = vpop.f32.mrf.mxu0
        %937 = vdwg.mxu0
        %938 = vmatpush.bf16.msra.mxu0 %v822
        %939 = vmatpush.bf16.msra.mxu0 %v818
        %940 = vmatpush.bf16.msra.mxu0 %v814
        %941 = vmatpush.bf16.msra.mxu0 %v810
        %942 = vmatpush.bf16.msra.mxu0 %v806
        %943 = vmatpush.bf16.msra.mxu0 %v802
        %944 = vmatpush.bf16.msra.mxu0 %v798
        %945 = vmatpush.bf16.msra.mxu0 %v794
        %946 = vmatmul.bf16.gmra.mxu0 %v863
        %v947 = vpop.f32.mrf.mxu0
        %v948 = vadd.f32 %v831, %v947
        %v949 = vpop.f32.mrf.mxu0
        %v950 = vadd.f32 %v836, %v949
        %951 = vmatmul.bf16.gmra.mxu0 %v864
        %v952 = vpop.f32.mrf.mxu0
        %v953 = vadd.f32 %v841, %v952
        %v954 = vpop.f32.mrf.mxu0
        %v955 = vadd.f32 %v846, %v954
        %956 = vmatmul.bf16.gmra.mxu0 %v865
        %v957 = vpop.f32.mrf.mxu0
        %v958 = vadd.f32 %v851, %v957
        %v959 = vpop.f32.mrf.mxu0
        %960 = vdwg.mxu0
        %vm961 = vcmp.gt.f32.partialorder %v879, 0.0
        %vm962 = vcmp.gt.f32.partialorder %v902, 0.0
        %vm963 = vcmp.gt.f32.partialorder %v925, 0.0
        %vm964 = vcmp.gt.f32.partialorder %v948, 0.0
        %vm965 = vcmp.gt.f32.partialorder %v881, 0.0
        %vm966 = vcmp.gt.f32.partialorder %v904, 0.0
        %vm967 = vcmp.gt.f32.partialorder %v927, 0.0
        %vm968 = vcmp.gt.f32.partialorder %v950, 0.0
        %vm969 = vcmp.gt.f32.partialorder %v884, 0.0
        %vm970 = vcmp.gt.f32.partialorder %v907, 0.0
        %vm971 = vcmp.gt.f32.partialorder %v930, 0.0
        %vm972 = vcmp.gt.f32.partialorder %v953, 0.0
        %vm973 = vcmp.gt.f32.partialorder %v886, 0.0
        %vm974 = vcmp.gt.f32.partialorder %v909, 0.0
        %vm975 = vcmp.gt.f32.partialorder %v932, 0.0
        %vm976 = vcmp.gt.f32.partialorder %v955, 0.0
        %vm977 = vcmp.gt.f32.partialorder %v889, 0.0
        %vm978 = vcmp.gt.f32.partialorder %v912, 0.0
        %vm979 = vcmp.gt.f32.partialorder %v935, 0.0
        %vm980 = vcmp.gt.f32.partialorder %v958, 0.0
        %v981 = vstv %s317
        %v982 = vmul.f32 %v981, %v879
        %v983 = vmul.f32 %v981, %v902
        %v984 = vmul.f32 %v981, %v925
        %v985 = vmul.f32 %v981, %v948
        %v986 = vmul.f32 %v981, %v881
        %v987 = vmul.f32 %v981, %v904
        %v988 = vmul.f32 %v981, %v927
        %v989 = vmul.f32 %v981, %v950
        %v990 = vmul.f32 %v981, %v884
        %v991 = vmul.f32 %v981, %v907
        %v992 = vmul.f32 %v981, %v930
        %v993 = vmul.f32 %v981, %v953
        %v994 = vmul.f32 %v981, %v886
        %v995 = vmul.f32 %v981, %v909
        %v996 = vmul.f32 %v981, %v932
        %v997 = vmul.f32 %v981, %v955
        %v998 = vmul.f32 %v981, %v889
        %v999 = vmul.f32 %v981, %v912
        %v1000 = vmul.f32 %v981, %v935
        %v1001 = vmul.f32 %v981, %v958
        %v1002 = vsel %vm961, %v879, %v982
        %v1003 = vsel %vm962, %v902, %v983
        %v1004 = vsel %vm963, %v925, %v984
        %v1005 = vsel %vm964, %v948, %v985
        %v1006 = vsel %vm965, %v881, %v986
        %v1007 = vsel %vm966, %v904, %v987
        %v1008 = vsel %vm967, %v927, %v988
        %v1009 = vsel %vm968, %v950, %v989
        %v1010 = vsel %vm969, %v884, %v990
        %v1011 = vsel %vm970, %v907, %v991
        %v1012 = vsel %vm971, %v930, %v992
        %v1013 = vsel %vm972, %v953, %v993
        %v1014 = vsel %vm973, %v886, %v994
        %v1015 = vsel %vm974, %v909, %v995
        %v1016 = vsel %vm975, %v932, %v996
        %v1017 = vsel %vm976, %v955, %v997
        %v1018 = vsel %vm977, %v889, %v998
        %v1019 = vsel %vm978, %v912, %v999
        %v1020 = vsel %vm979, %v935, %v1000
        %v1021 = vsel %vm980, %v958, %v1001
        %1022 = vst [vmem:[%s312] sm:$0xff] %v1002
        %1023 = vst [vmem:[%s312 + $0x8] sm:$0xff] %v1003
        %1024 = vst [vmem:[%s312 + $0x10] sm:$0xff] %v1004
        %1025 = vst [vmem:[%s312 + $0x18] sm:$0xff] %v1005
        %1026 = vst [vmem:[%s312 + $0x20] sm:$0xff] %v1006
        %1027 = vst [vmem:[%s312 + $0x28] sm:$0xff] %v1007
        %1028 = vst [vmem:[%s312 + $0x30] sm:$0xff] %v1008
        %1029 = vst [vmem:[%s312 + $0x38] sm:$0xff] %v1009
        %1030 = vst [vmem:[%s312 + $0x40] sm:$0xff] %v1010
        %1031 = vst [vmem:[%s312 + $0x48] sm:$0xff] %v1011
        %1032 = vst [vmem:[%s312 + $0x50] sm:$0xff] %v1012
        %1033 = vst [vmem:[%s312 + $0x58] sm:$0xff] %v1013
        %1034 = vst [vmem:[%s312 + $0x60] sm:$0xff] %v1014
        %1035 = vst [vmem:[%s312 + $0x68] sm:$0xff] %v1015
        %1036 = vst [vmem:[%s312 + $0x70] sm:$0xff] %v1016
        %1037 = vst [vmem:[%s312 + $0x78] sm:$0xff] %v1017
        %1038 = vst [vmem:[%s312 + $0x80] sm:$0xff] %v1018
        %1039 = vst [vmem:[%s312 + $0x88] sm:$0xff] %v1019
        %1040 = vst [vmem:[%s312 + $0x90] sm:$0xff] %v1020
        %1041 = vst [vmem:[%s312 + $0x98] sm:$0xff] %v1021
        %s1042 = sand.u32 %s185, 1
        %s1043 = scalar_lea.sflag [#allocation5], %s1042
        %s1044 = sand.u32 %s185, 1
        %s1045 = smul.addr %s1044, 160
        %s1046 = scalar_lea.vmem [#allocation8], %s1045
        // Predicated region
        $region57: #{tpu_custom_call.1} parent=47 // pred_check
          %p1047 = pneg %p195
        $region58: #{tpu_custom_call.1} parent=47 // pred_check_branch
          %1049 = sbr.rel (%p1047) target = $region60
        $region59: #{tpu_custom_call.1} parent=47 // pred_region
          %s1050 = smul.u32 4, %s25
          %1052 = vsyncadd %s1043, 0
          %s1053 = smul.addr %s1050, 8
          %s1054 = scalar_lea.hbm %s7, %s1053
          %s1055 = sshll.u32 %s1046, 4
          %s1056 = int_to_ptr.vmem [resolvable:$true] %s1055
          %s1057 = sshll.u32 %s1054, 4
          %s1058 = int_to_ptr.hbm [resolvable:$true] %s1057
          %1063 = dma.vmem_to_hbm [thread:$0]  %s1056, 2560, %s1058, %s1043, 512, 1024, 32
        $region60: #{tpu_custom_call.1} parent=47 // pred_fallthru
          _
      $region48: #{tpu_custom_call.1} parent=5 // pred_fallthru
        _
      %p1064 = scmp.le.s32.totalorder 2, %s20
      // Predicated region
      $region61: #{tpu_custom_call.1} parent=5 // pred_check
        %p1065 = pneg %p1064
      $region62: #{tpu_custom_call.1} parent=5 // pred_check_branch
        %1067 = sbr.rel (%p1065) target = $region64
      $region63: #{tpu_custom_call.1} parent=5 // pred_region
        %s1068 = ssub.s32 %s20, 2
        // Predicated region
        $region65: #{tpu_custom_call.1} parent=63 // pred_check
          %p1069 = pneg %p201
        $region66: #{tpu_custom_call.1} parent=63 // pred_check_branch
          %1071 = sbr.rel (%p1069) target = $region68
        $region67: #{tpu_custom_call.1} parent=63 // pred_region
          %s1072 = sand.u32 %s186, 1
          %s1073 = scalar_lea.sflag [#allocation5], %s1072
          %s1074 = sand.u32 %s186, 1
          %s1075 = smul.addr %s1074, 160
          %s1076 = scalar_lea.vmem [#allocation8], %s1075
          %1078 = dma.done %s1073, 2560
        $region68: #{tpu_custom_call.1} parent=63 // pred_fallthru
          _
      $region64: #{tpu_custom_call.1} parent=5 // pred_fallthru
        _
    $region6: #{tpu_custom_call.1} parent=1 // loop_footer
      %s24 = sadd.s32 1, %s20
    $region7: #{tpu_custom_call.1} parent=1 // loop_footer_branch
      %19 = sbr.rel target = $region3
    $region8: #{tpu_custom_call.1} parent=1 // loop_exit
      _
    %1079 = vsyncpa [#allocation4], 1
    %s1080 = scalar_lea.sflag [#allocation4], 1
    %1081 = vsyncpa %s1080, 1
    %1082 = vsyncpa [#allocation5], 1
    %s1083 = scalar_lea.sflag [#allocation5], 1
    %1084 = vsyncpa %s1083, 1
    %1085 = vsyncpa [#allocation6], 1
    %s1086 = scalar_lea.sflag [#allocation6], 1
    %1087 = vsyncpa %s1086, 1

</llo_original>
